<compile_context>
chip_gen: v6e
topology: v6e:2x2x1
jax: 0.10.0
libtpu: 0.0.40
codegen_flags: <defaults>
</compile_context>

<pallas_src>
import jax
import jax.numpy as jnp
from jax.experimental import pallas as pl
from jax.experimental.pallas import tpu as pltpu


def decoder_gru_kernel(x_ref, h0_ref, w_ih_ref, w_hh_ref, b_gi_ref, b_hn_ref,
                       w_lin_ref, b_lin_ref, y_ref, seq_scr, gi_scr):
    """GRU stack + Linear, time-major, batch padded to the f32 sublane tile.

    x_ref:     (T*Bp, H)    bf16  flattened time-major input (rows t*Bp..t*Bp+Bp-1)
    h0_ref:    (L, Bp, H)   f32   initial hidden state per layer
    w_ih_ref:  (L, H, 3H)   bf16  fused input->gates weights (r|z|n along lanes)
    w_hh_ref:  (L, H, 3H)   bf16  fused hidden->gates weights (r|z|n along lanes)
    b_gi_ref:  (L, 1, 3H)   f32   hoisted bias (b_ih, with b_hh folded in for r,z)
    b_hn_ref:  (L, 1, H)    f32   hidden bias of the n gate (stays inside r*(.))
    w_lin_ref: (H, Op)      bf16  linear weight, transposed, zero-padded to Op lanes
    b_lin_ref: (1, Op)      f32   linear bias, zero-padded
    y_ref:     (T*Bp, Op)   f32   lane-dense output (real cols sliced in wrapper)
    seq_scr:   (T*Bp, H)    bf16  running layer outputs (next layer / Linear input)
    gi_scr:    (T*Bp, 3H)   f32   hoisted input->gate pre-activations
    """
    TB, H = x_ref.shape
    L, Bp, _ = h0_ref.shape
    T = TB // Bp
    H2 = 2 * H

    for l in range(L):  # layers are sequentially dependent -> static loop
        # ---- hoisted input->gates: ONE (T*Bp,H)@(H,3H) matmul per layer -----
        inp = x_ref[...] if l == 0 else seq_scr[...]          # bf16 either way
        gi_scr[...] = (jnp.dot(inp, w_ih_ref[l],
                               preferred_element_type=jnp.float32)
                       + b_gi_ref[l])

        w_hh = w_hh_ref[l]                    # (H, 3H) bf16, r|z|n along lanes
        b_n = b_hn_ref[l]                     # (1, H)  f32

        h_f = h0_ref[l]                       # (Bp, H) f32 carry (registers only)
        h_b = h_f.astype(jnp.bfloat16)
        # T is small & static: fully unrolled recurrence; every slice offset is
        # static and a multiple of the 8-row sublane tile.
        for t in range(T):
            rows = pl.ds(t * Bp, Bp)
            # ONE fused (Bp,H)@(H,3H) recurrent matmul (96 lanes, single MXU pass)
            gh = jnp.dot(h_b, w_hh, preferred_element_type=jnp.float32)
            gi = gi_scr[rows, :]              # single contiguous (Bp,3H) load
            # r and z share one add + one sigmoid over the first 2H lanes
            rz = jax.nn.sigmoid(gi[:, :H2] + gh[:, :H2])
            r = rz[:, :H]
            z = rz[:, H:]
            n = jnp.tanh(gi[:, H2:] + r * (gh[:, H2:] + b_n))
            h_f = (1.0 - z) * n + z * h_f     # f32 gate math (v5e-safe)
            h_b = h_f.astype(jnp.bfloat16)    # single cast: stored AND reused
            seq_scr[rows, :] = h_b            # bf16 layer output

    # ---- fused, lane-dense output projection: one matmul, one dense store ---
    y_ref[...] = (jnp.dot(seq_scr[...], w_lin_ref[...],
                          preferred_element_type=jnp.float32)
                  + b_lin_ref[...])


def prepare_params(params):
    """One-time weight preparation (fuse gates along lanes, transpose, bf16)."""
    w_ih, w_hh = params["w_ih"], params["w_hh"]          # (L, 3H, H)
    b_ih, b_hh = params["b_ih"], params["b_hh"]          # (L, 3H)
    w_lin, b_lin = params["w_lin"], params["b_lin"]      # (O, H), (O,)
    L, threeH, H = w_ih.shape
    O = w_lin.shape[0]
    Op = max(128, ((O + 127) // 128) * 128)               # lane-dense output width

    # Fused, input-major layout with gates r|z|n concatenated along lanes:
    # this is exactly W.T since torch stacks gate rows in r|z|n order.
    w_ih_f = jnp.transpose(w_ih, (0, 2, 1)).astype(jnp.bfloat16)   # (L, H, 3H)
    w_hh_f = jnp.transpose(w_hh, (0, 2, 1)).astype(jnp.bfloat16)   # (L, H, 3H)

    # Biases: fold b_hh of r,z into the hoisted input-side bias; keep b_hh of n
    # separate (it sits inside the r * (.) term).
    b_gi = (b_ih.astype(jnp.float32)
            .at[:, :2 * H].add(b_hh[:, :2 * H].astype(jnp.float32))
            .reshape(L, 1, threeH))                                # (L, 1, 3H)
    b_hn = b_hh[:, 2 * H:].reshape(L, 1, H).astype(jnp.float32)    # (L, 1, H)

    # Lane-dense Linear head: pad O -> Op with zero columns (sliced in wrapper).
    w_lin_t = jnp.zeros((H, Op), jnp.float32).at[:, :O].set(jnp.transpose(w_lin))
    b_lin_p = jnp.zeros((1, Op), jnp.float32).at[0, :O].set(b_lin)

    return dict(
        w_ih=w_ih_f, w_hh=w_hh_f, b_gi=b_gi, b_hn=b_hn,
        w_lin=w_lin_t.astype(jnp.bfloat16),                        # (H, Op)
        b_lin=b_lin_p,                                             # (1, Op)
    )


def decoder_gru_forward(x, hidden, prep, out_size):
    """Pallas equivalent of DecoderGRU.forward.

    x:      (B, T, H) batch_first, like PyTorch
    hidden: (L, B, H)
    returns (B, T, out_size)
    """
    B, T, H = x.shape
    Op = prep["w_lin"].shape[1]
    Bp = ((B + 7) // 8) * 8          # pad batch to the sublane tile (free rows)

    x_t = jnp.transpose(x, (1, 0, 2)).astype(jnp.float32)          # (T, B, H)
    x_p = jnp.pad(x_t, ((0, 0), (0, Bp - B), (0, 0)))              # (T, Bp, H)
    x_flat = x_p.reshape(T * Bp, H).astype(jnp.bfloat16)           # (T*Bp, H)
    h0 = jnp.pad(hidden.astype(jnp.float32), ((0, 0), (0, Bp - B), (0, 0)))

    vspec = pl.BlockSpec(memory_space=pltpu.MemorySpace.VMEM)
    y_flat = pl.pallas_call(
        decoder_gru_kernel,
        out_shape=jax.ShapeDtypeStruct((T * Bp, Op), jnp.float32),
        in_specs=[vspec] * 8,
        out_specs=vspec,
        scratch_shapes=[pltpu.VMEM((T * Bp, H), jnp.bfloat16),       # seq_scr
                        pltpu.VMEM((T * Bp, 3 * H), jnp.float32)],   # gi_scr
    )(x_flat, h0, prep["w_ih"], prep["w_hh"], prep["b_gi"], prep["b_hn"],
      prep["w_lin"], prep["b_lin"])

    y = y_flat.reshape(T, Bp, Op)[:, :B, :out_size]                # drop padding
    return jnp.transpose(y, (1, 0, 2))                             # (B, T, O)


def ref_decoder_gru(x, hidden, params, matmul_dtype=jnp.bfloat16):
    """Pure-JAX reference replicating torch.nn.GRU (gate order r|z|n) + Linear.

    matmul_dtype=jnp.bfloat16 mirrors the kernel's MXU operand precision
    (f32 accumulation); matmul_dtype=jnp.float32 is the exact PyTorch-equivalent
    reference. Gate math is f32 in both cases.
    """
    w_ih, w_hh = params["w_ih"], params["w_hh"]
    b_ih, b_hh = params["b_ih"], params["b_hh"]
    w_lin, b_lin = params["w_lin"], params["b_lin"]
    B, T, H = x.shape
    L = hidden.shape[0]

    def mdot(a, b):
        return jnp.dot(a.astype(matmul_dtype), b.astype(matmul_dtype),
                       preferred_element_type=jnp.float32)

    seq = x.astype(jnp.float32)
    for l in range(L):
        h = hidden[l].astype(jnp.float32)
        outs = []
        for t in range(T):
            xt = seq[:, t, :]
            gi = mdot(xt, w_ih[l].T) + b_ih[l]
            gh = mdot(h, w_hh[l].T) + b_hh[l]
            r = jax.nn.sigmoid(gi[:, 0:H] + gh[:, 0:H])
            z = jax.nn.sigmoid(gi[:, H:2 * H] + gh[:, H:2 * H])
            n = jnp.tanh(gi[:, 2 * H:3 * H] + r * gh[:, 2 * H:3 * H])
            h = (1.0 - z) * n + z * h
            outs.append(h)
        seq = jnp.stack(outs, axis=1)
    return mdot(seq, w_lin.T) + b_lin


def init_params(key, hidden_size, output_size, num_layers):
    """Deterministic synthetic parameters (xavier_uniform-style, gain=sqrt(2))."""
    H, O, L = hidden_size, output_size, num_layers
    ks = jax.random.split(key, 6)
    gain = 2.0 ** 0.5

    def xavier(k, shape, fan_in, fan_out):
        a = gain * (6.0 / (fan_in + fan_out)) ** 0.5
        return jax.random.uniform(k, shape, jnp.float32, -a, a)

    return dict(
        w_ih=xavier(ks[0], (L, 3 * H, H), H, 3 * H),
        w_hh=xavier(ks[1], (L, 3 * H, H), H, 3 * H),
        b_ih=0.1 * jax.random.normal(ks[2], (L, 3 * H), jnp.float32),
        b_hh=0.1 * jax.random.normal(ks[3], (L, 3 * H), jnp.float32),
        w_lin=xavier(ks[4], (O, H), H, O),
        b_lin=0.1 * jax.random.normal(ks[5], (O,), jnp.float32),
    )


if __name__ == "__main__":
    hidden_size, output_size, num_layers = 32, 16, 2
    B, T = 2, 8

    key = jax.random.PRNGKey(0)
    kx, kh, kp = jax.random.split(key, 3)
    encoded_input = jax.random.normal(kx, (B, T, hidden_size), jnp.float32)
    hidden = jax.random.normal(kh, (num_layers, B, hidden_size), jnp.float32)
    params = init_params(kp, hidden_size, output_size, num_layers)
    prep = prepare_params(params)          # one-time weight prep (not per call)

    fwd = jax.jit(lambda xx, hh, pp: decoder_gru_forward(xx, hh, pp, output_size))
    y = jax.block_until_ready(fwd(encoded_input, hidden, prep))
    assert y.shape == (B, T, output_size), y.shape

    # 1) Precision-matched check: reference also uses bf16 MXU operands, so any
    #    structural bug (gate order, missing r factor, bias placement) shows up
    #    well above 1e-2.
    y_bf16 = ref_decoder_gru(encoded_input, hidden, params, jnp.bfloat16)
    err_bf16 = float(jnp.max(jnp.abs(y - y_bf16)))
    assert jnp.allclose(y, y_bf16, atol=1e-2, rtol=1e-2), err_bf16

    # 2) Exact-f32 PyTorch-equivalent check with a derived bf16-rounding bound:
    #    bf16 operand rounding ~2^-8 relative, pre-activations O(1), recurrence
    #    contractive (sigmoid/tanh Lipschitz <= 1), output projection sums 32
    #    ~O(0.3) terms -> accumulated |err| << 0.1, whereas structural bugs show
    #    up at O(0.3..1).
    y_f32 = ref_decoder_gru(encoded_input, hidden, params, jnp.float32)
    err_f32 = float(jnp.max(jnp.abs(y - y_f32)))
    assert jnp.allclose(y, y_f32, atol=1e-1, rtol=1e-1), err_f32

    print("KERNEL_OK")
</pallas_src>

<mosaic_0001>
module attributes {stable_mosaic.version = 11 : i64} {
  func.func @decoder_gru_kernel(%arg0: memref<64x32xbf16, #tpu.memory_space<vmem>>, %arg1: memref<2x8x32xf32, #tpu.memory_space<vmem>>, %arg2: memref<2x32x96xbf16, #tpu.memory_space<vmem>>, %arg3: memref<2x32x96xbf16, #tpu.memory_space<vmem>>, %arg4: memref<2x1x96xf32, #tpu.memory_space<vmem>>, %arg5: memref<2x1x32xf32, #tpu.memory_space<vmem>>, %arg6: memref<32x128xbf16, #tpu.memory_space<vmem>>, %arg7: memref<1x128xf32, #tpu.memory_space<vmem>>, %arg8: memref<64x128xf32, #tpu.memory_space<vmem>>, %arg9: memref<64x32xbf16, #tpu.memory_space<vmem>>, %arg10: memref<64x96xf32, #tpu.memory_space<vmem>>) attributes {dimension_semantics = [], scalar_prefetch = 0 : i64, scratch_operands = 2 : i64, tpu.core_type = #tpu.core_type<tc>} {
    %c0 = arith.constant 0 : index
    %c0_0 = arith.constant 0 : index
    %0 = vector.load %arg0[%c0, %c0_0] : memref<64x32xbf16, #tpu.memory_space<vmem>>, vector<64x32xbf16>
    %c0_1 = arith.constant 0 : index
    %c0_2 = arith.constant 0 : index
    %c0_3 = arith.constant 0 : index
    %1 = vector.load %arg2[%c0_1, %c0_2, %c0_3] : memref<2x32x96xbf16, #tpu.memory_space<vmem>>, vector<1x32x96xbf16>
    %2 = vector.shape_cast %1 : vector<1x32x96xbf16> to vector<32x96xbf16>
    %cst = arith.constant dense<0.000000e+00> : vector<64x96xf32>
    %3 = tpu.matmul %0, %2, %cst {dimension_numbers = #tpu.dot_dimension_numbers<[1], [0], [0], [1], [0, 0, 1, 1], [], []>} : vector<64x32xbf16>, vector<32x96xbf16>, vector<64x96xf32> -> vector<64x96xf32>
    %c0_4 = arith.constant 0 : index
    %c0_5 = arith.constant 0 : index
    %c0_6 = arith.constant 0 : index
    %4 = vector.load %arg4[%c0_4, %c0_5, %c0_6] : memref<2x1x96xf32, #tpu.memory_space<vmem>>, vector<1x1x96xf32>
    %5 = vector.shape_cast %4 : vector<1x1x96xf32> to vector<1x96xf32>
    %6 = vector.broadcast %5 : vector<1x96xf32> to vector<64x96xf32>
    %7 = arith.addf %3, %6 : vector<64x96xf32>
    %c0_7 = arith.constant 0 : index
    %c0_8 = arith.constant 0 : index
    %8 = vector.load %arg10[%c0_7, %c0_8] : memref<64x96xf32, #tpu.memory_space<vmem>>, vector<64x96xf32>
    tpu.vector_store %arg10[%c0_7, %c0_8], %7 {strides = array<i32>} : memref<64x96xf32, #tpu.memory_space<vmem>>, vector<64x96xf32>,
    %c0_9 = arith.constant 0 : index
    %c0_10 = arith.constant 0 : index
    %c0_11 = arith.constant 0 : index
    %9 = vector.load %arg3[%c0_9, %c0_10, %c0_11] : memref<2x32x96xbf16, #tpu.memory_space<vmem>>, vector<1x32x96xbf16>
    %10 = vector.shape_cast %9 : vector<1x32x96xbf16> to vector<32x96xbf16>
    %c0_12 = arith.constant 0 : index
    %c0_13 = arith.constant 0 : index
    %c0_14 = arith.constant 0 : index
    %11 = vector.load %arg5[%c0_12, %c0_13, %c0_14] : memref<2x1x32xf32, #tpu.memory_space<vmem>>, vector<1x1x32xf32>
    %12 = vector.shape_cast %11 : vector<1x1x32xf32> to vector<1x32xf32>
    %c0_15 = arith.constant 0 : index
    %c0_16 = arith.constant 0 : index
    %c0_17 = arith.constant 0 : index
    %13 = vector.load %arg1[%c0_15, %c0_16, %c0_17] : memref<2x8x32xf32, #tpu.memory_space<vmem>>, vector<1x8x32xf32>
    %14 = vector.shape_cast %13 : vector<1x8x32xf32> to vector<8x32xf32>
    %15 = arith.truncf %14 : vector<8x32xf32> to vector<8x32xbf16>
    %cst_18 = arith.constant dense<0.000000e+00> : vector<8x96xf32>
    %16 = tpu.matmul %15, %10, %cst_18 {dimension_numbers = #tpu.dot_dimension_numbers<[1], [0], [0], [1], [0, 0, 1, 1], [], []>} : vector<8x32xbf16>, vector<32x96xbf16>, vector<8x96xf32> -> vector<8x96xf32>
    %c0_19 = arith.constant 0 : index
    %c0_20 = arith.constant 0 : index
    %17 = vector.load %arg10[%c0_19, %c0_20] : memref<64x96xf32, #tpu.memory_space<vmem>>, vector<8x96xf32>
    %18 = vector.extract_strided_slice %17 {offsets = [0, 0], sizes = [8, 64], strides = [1, 1]} : vector<8x96xf32> to vector<8x64xf32>
    %19 = vector.extract_strided_slice %16 {offsets = [0, 0], sizes = [8, 64], strides = [1, 1]} : vector<8x96xf32> to vector<8x64xf32>
    %20 = arith.addf %18, %19 : vector<8x64xf32>
    %21 = arith.negf %20 : vector<8x64xf32>
    %22 = math.exp %21 : vector<8x64xf32>
    %cst_21 = arith.constant 1.000000e+00 : f32
    %23 = vector.broadcast %cst_21 : f32 to vector<8x64xf32>
    %24 = arith.addf %23, %22 : vector<8x64xf32>
    %25 = arith.divf %23, %24 : vector<8x64xf32>
    %26 = vector.extract_strided_slice %25 {offsets = [0, 0], sizes = [8, 32], strides = [1, 1]} : vector<8x64xf32> to vector<8x32xf32>
    %27 = vector.extract_strided_slice %25 {offsets = [0, 32], sizes = [8, 32], strides = [1, 1]} : vector<8x64xf32> to vector<8x32xf32>
    %28 = vector.extract_strided_slice %17 {offsets = [0, 64], sizes = [8, 32], strides = [1, 1]} : vector<8x96xf32> to vector<8x32xf32>
    %29 = vector.extract_strided_slice %16 {offsets = [0, 64], sizes = [8, 32], strides = [1, 1]} : vector<8x96xf32> to vector<8x32xf32>
    %30 = vector.broadcast %12 : vector<1x32xf32> to vector<8x32xf32>
    %31 = arith.addf %29, %30 : vector<8x32xf32>
    %32 = arith.mulf %26, %31 : vector<8x32xf32>
    %33 = arith.addf %28, %32 : vector<8x32xf32>
    %34 = math.tanh %33 : vector<8x32xf32>
    %cst_22 = arith.constant 1.000000e+00 : f32
    %35 = vector.broadcast %cst_22 : f32 to vector<8x32xf32>
    %36 = arith.subf %35, %27 : vector<8x32xf32>
    %37 = arith.mulf %36, %34 : vector<8x32xf32>
    %38 = arith.mulf %27, %14 : vector<8x32xf32>
    %39 = arith.addf %37, %38 : vector<8x32xf32>
    %40 = arith.truncf %39 : vector<8x32xf32> to vector<8x32xbf16>
    %c0_23 = arith.constant 0 : index
    %c0_24 = arith.constant 0 : index
    %41 = vector.load %arg9[%c0_23, %c0_24] : memref<64x32xbf16, #tpu.memory_space<vmem>>, vector<8x32xbf16>
    tpu.vector_store %arg9[%c0_23, %c0_24], %40 {strides = array<i32>} : memref<64x32xbf16, #tpu.memory_space<vmem>>, vector<8x32xbf16>,
    %cst_25 = arith.constant dense<0.000000e+00> : vector<8x96xf32>
    %42 = tpu.matmul %40, %10, %cst_25 {dimension_numbers = #tpu.dot_dimension_numbers<[1], [0], [0], [1], [0, 0, 1, 1], [], []>} : vector<8x32xbf16>, vector<32x96xbf16>, vector<8x96xf32> -> vector<8x96xf32>
    %c8 = arith.constant 8 : index
    %c0_26 = arith.constant 0 : index
    %43 = vector.load %arg10[%c8, %c0_26] : memref<64x96xf32, #tpu.memory_space<vmem>>, vector<8x96xf32>
    %44 = vector.extract_strided_slice %43 {offsets = [0, 0], sizes = [8, 64], strides = [1, 1]} : vector<8x96xf32> to vector<8x64xf32>
    %45 = vector.extract_strided_slice %42 {offsets = [0, 0], sizes = [8, 64], strides = [1, 1]} : vector<8x96xf32> to vector<8x64xf32>
    %46 = arith.addf %44, %45 : vector<8x64xf32>
    %47 = arith.negf %46 : vector<8x64xf32>
    %48 = math.exp %47 : vector<8x64xf32>
    %cst_27 = arith.constant 1.000000e+00 : f32
    %49 = vector.broadcast %cst_27 : f32 to vector<8x64xf32>
    %50 = arith.addf %49, %48 : vector<8x64xf32>
    %51 = arith.divf %49, %50 : vector<8x64xf32>
    %52 = vector.extract_strided_slice %51 {offsets = [0, 0], sizes = [8, 32], strides = [1, 1]} : vector<8x64xf32> to vector<8x32xf32>
    %53 = vector.extract_strided_slice %51 {offsets = [0, 32], sizes = [8, 32], strides = [1, 1]} : vector<8x64xf32> to vector<8x32xf32>
    %54 = vector.extract_strided_slice %43 {offsets = [0, 64], sizes = [8, 32], strides = [1, 1]} : vector<8x96xf32> to vector<8x32xf32>
    %55 = vector.extract_strided_slice %42 {offsets = [0, 64], sizes = [8, 32], strides = [1, 1]} : vector<8x96xf32> to vector<8x32xf32>
    %56 = vector.broadcast %12 : vector<1x32xf32> to vector<8x32xf32>
    %57 = arith.addf %55, %56 : vector<8x32xf32>
    %58 = arith.mulf %52, %57 : vector<8x32xf32>
    %59 = arith.addf %54, %58 : vector<8x32xf32>
    %60 = math.tanh %59 : vector<8x32xf32>
    %cst_28 = arith.constant 1.000000e+00 : f32
    %61 = vector.broadcast %cst_28 : f32 to vector<8x32xf32>
    %62 = arith.subf %61, %53 : vector<8x32xf32>
    %63 = arith.mulf %62, %60 : vector<8x32xf32>
    %64 = arith.mulf %53, %39 : vector<8x32xf32>
    %65 = arith.addf %63, %64 : vector<8x32xf32>
    %66 = arith.truncf %65 : vector<8x32xf32> to vector<8x32xbf16>
    %c8_29 = arith.constant 8 : index
    %c0_30 = arith.constant 0 : index
    %67 = vector.load %arg9[%c8_29, %c0_30] : memref<64x32xbf16, #tpu.memory_space<vmem>>, vector<8x32xbf16>
    tpu.vector_store %arg9[%c8_29, %c0_30], %66 {strides = array<i32>} : memref<64x32xbf16, #tpu.memory_space<vmem>>, vector<8x32xbf16>,
    %cst_31 = arith.constant dense<0.000000e+00> : vector<8x96xf32>
    %68 = tpu.matmul %66, %10, %cst_31 {dimension_numbers = #tpu.dot_dimension_numbers<[1], [0], [0], [1], [0, 0, 1, 1], [], []>} : vector<8x32xbf16>, vector<32x96xbf16>, vector<8x96xf32> -> vector<8x96xf32>
    %c16 = arith.constant 16 : index
    %c0_32 = arith.constant 0 : index
    %69 = vector.load %arg10[%c16, %c0_32] : memref<64x96xf32, #tpu.memory_space<vmem>>, vector<8x96xf32>
    %70 = vector.extract_strided_slice %69 {offsets = [0, 0], sizes = [8, 64], strides = [1, 1]} : vector<8x96xf32> to vector<8x64xf32>
    %71 = vector.extract_strided_slice %68 {offsets = [0, 0], sizes = [8, 64], strides = [1, 1]} : vector<8x96xf32> to vector<8x64xf32>
    %72 = arith.addf %70, %71 : vector<8x64xf32>
    %73 = arith.negf %72 : vector<8x64xf32>
    %74 = math.exp %73 : vector<8x64xf32>
    %cst_33 = arith.constant 1.000000e+00 : f32
    %75 = vector.broadcast %cst_33 : f32 to vector<8x64xf32>
    %76 = arith.addf %75, %74 : vector<8x64xf32>
    %77 = arith.divf %75, %76 : vector<8x64xf32>
    %78 = vector.extract_strided_slice %77 {offsets = [0, 0], sizes = [8, 32], strides = [1, 1]} : vector<8x64xf32> to vector<8x32xf32>
    %79 = vector.extract_strided_slice %77 {offsets = [0, 32], sizes = [8, 32], strides = [1, 1]} : vector<8x64xf32> to vector<8x32xf32>
    %80 = vector.extract_strided_slice %69 {offsets = [0, 64], sizes = [8, 32], strides = [1, 1]} : vector<8x96xf32> to vector<8x32xf32>
    %81 = vector.extract_strided_slice %68 {offsets = [0, 64], sizes = [8, 32], strides = [1, 1]} : vector<8x96xf32> to vector<8x32xf32>
    %82 = vector.broadcast %12 : vector<1x32xf32> to vector<8x32xf32>
    %83 = arith.addf %81, %82 : vector<8x32xf32>
    %84 = arith.mulf %78, %83 : vector<8x32xf32>
    %85 = arith.addf %80, %84 : vector<8x32xf32>
    %86 = math.tanh %85 : vector<8x32xf32>
    %cst_34 = arith.constant 1.000000e+00 : f32
    %87 = vector.broadcast %cst_34 : f32 to vector<8x32xf32>
    %88 = arith.subf %87, %79 : vector<8x32xf32>
    %89 = arith.mulf %88, %86 : vector<8x32xf32>
    %90 = arith.mulf %79, %65 : vector<8x32xf32>
    %91 = arith.addf %89, %90 : vector<8x32xf32>
    %92 = arith.truncf %91 : vector<8x32xf32> to vector<8x32xbf16>
    %c16_35 = arith.constant 16 : index
    %c0_36 = arith.constant 0 : index
    %93 = vector.load %arg9[%c16_35, %c0_36] : memref<64x32xbf16, #tpu.memory_space<vmem>>, vector<8x32xbf16>
    tpu.vector_store %arg9[%c16_35, %c0_36], %92 {strides = array<i32>} : memref<64x32xbf16, #tpu.memory_space<vmem>>, vector<8x32xbf16>,
    %cst_37 = arith.constant dense<0.000000e+00> : vector<8x96xf32>
    %94 = tpu.matmul %92, %10, %cst_37 {dimension_numbers = #tpu.dot_dimension_numbers<[1], [0], [0], [1], [0, 0, 1, 1], [], []>} : vector<8x32xbf16>, vector<32x96xbf16>, vector<8x96xf32> -> vector<8x96xf32>
    %c24 = arith.constant 24 : index
    %c0_38 = arith.constant 0 : index
    %95 = vector.load %arg10[%c24, %c0_38] : memref<64x96xf32, #tpu.memory_space<vmem>>, vector<8x96xf32>
    %96 = vector.extract_strided_slice %95 {offsets = [0, 0], sizes = [8, 64], strides = [1, 1]} : vector<8x96xf32> to vector<8x64xf32>
    %97 = vector.extract_strided_slice %94 {offsets = [0, 0], sizes = [8, 64], strides = [1, 1]} : vector<8x96xf32> to vector<8x64xf32>
    %98 = arith.addf %96, %97 : vector<8x64xf32>
    %99 = arith.negf %98 : vector<8x64xf32>
    %100 = math.exp %99 : vector<8x64xf32>
    %cst_39 = arith.constant 1.000000e+00 : f32
    %101 = vector.broadcast %cst_39 : f32 to vector<8x64xf32>
    %102 = arith.addf %101, %100 : vector<8x64xf32>
    %103 = arith.divf %101, %102 : vector<8x64xf32>
    %104 = vector.extract_strided_slice %103 {offsets = [0, 0], sizes = [8, 32], strides = [1, 1]} : vector<8x64xf32> to vector<8x32xf32>
    %105 = vector.extract_strided_slice %103 {offsets = [0, 32], sizes = [8, 32], strides = [1, 1]} : vector<8x64xf32> to vector<8x32xf32>
    %106 = vector.extract_strided_slice %95 {offsets = [0, 64], sizes = [8, 32], strides = [1, 1]} : vector<8x96xf32> to vector<8x32xf32>
    %107 = vector.extract_strided_slice %94 {offsets = [0, 64], sizes = [8, 32], strides = [1, 1]} : vector<8x96xf32> to vector<8x32xf32>
    %108 = vector.broadcast %12 : vector<1x32xf32> to vector<8x32xf32>
    %109 = arith.addf %107, %108 : vector<8x32xf32>
    %110 = arith.mulf %104, %109 : vector<8x32xf32>
    %111 = arith.addf %106, %110 : vector<8x32xf32>
    %112 = math.tanh %111 : vector<8x32xf32>
    %cst_40 = arith.constant 1.000000e+00 : f32
    %113 = vector.broadcast %cst_40 : f32 to vector<8x32xf32>
    %114 = arith.subf %113, %105 : vector<8x32xf32>
    %115 = arith.mulf %114, %112 : vector<8x32xf32>
    %116 = arith.mulf %105, %91 : vector<8x32xf32>
    %117 = arith.addf %115, %116 : vector<8x32xf32>
    %118 = arith.truncf %117 : vector<8x32xf32> to vector<8x32xbf16>
    %c24_41 = arith.constant 24 : index
    %c0_42 = arith.constant 0 : index
    %119 = vector.load %arg9[%c24_41, %c0_42] : memref<64x32xbf16, #tpu.memory_space<vmem>>, vector<8x32xbf16>
    tpu.vector_store %arg9[%c24_41, %c0_42], %118 {strides = array<i32>} : memref<64x32xbf16, #tpu.memory_space<vmem>>, vector<8x32xbf16>,
    %cst_43 = arith.constant dense<0.000000e+00> : vector<8x96xf32>
    %120 = tpu.matmul %118, %10, %cst_43 {dimension_numbers = #tpu.dot_dimension_numbers<[1], [0], [0], [1], [0, 0, 1, 1], [], []>} : vector<8x32xbf16>, vector<32x96xbf16>, vector<8x96xf32> -> vector<8x96xf32>
    %c32 = arith.constant 32 : index
    %c0_44 = arith.constant 0 : index
    %121 = vector.load %arg10[%c32, %c0_44] : memref<64x96xf32, #tpu.memory_space<vmem>>, vector<8x96xf32>
    %122 = vector.extract_strided_slice %121 {offsets = [0, 0], sizes = [8, 64], strides = [1, 1]} : vector<8x96xf32> to vector<8x64xf32>
    %123 = vector.extract_strided_slice %120 {offsets = [0, 0], sizes = [8, 64], strides = [1, 1]} : vector<8x96xf32> to vector<8x64xf32>
    %124 = arith.addf %122, %123 : vector<8x64xf32>
    %125 = arith.negf %124 : vector<8x64xf32>
    %126 = math.exp %125 : vector<8x64xf32>
    %cst_45 = arith.constant 1.000000e+00 : f32
    %127 = vector.broadcast %cst_45 : f32 to vector<8x64xf32>
    %128 = arith.addf %127, %126 : vector<8x64xf32>
    %129 = arith.divf %127, %128 : vector<8x64xf32>
    %130 = vector.extract_strided_slice %129 {offsets = [0, 0], sizes = [8, 32], strides = [1, 1]} : vector<8x64xf32> to vector<8x32xf32>
    %131 = vector.extract_strided_slice %129 {offsets = [0, 32], sizes = [8, 32], strides = [1, 1]} : vector<8x64xf32> to vector<8x32xf32>
    %132 = vector.extract_strided_slice %121 {offsets = [0, 64], sizes = [8, 32], strides = [1, 1]} : vector<8x96xf32> to vector<8x32xf32>
    %133 = vector.extract_strided_slice %120 {offsets = [0, 64], sizes = [8, 32], strides = [1, 1]} : vector<8x96xf32> to vector<8x32xf32>
    %134 = vector.broadcast %12 : vector<1x32xf32> to vector<8x32xf32>
    %135 = arith.addf %133, %134 : vector<8x32xf32>
    %136 = arith.mulf %130, %135 : vector<8x32xf32>
    %137 = arith.addf %132, %136 : vector<8x32xf32>
    %138 = math.tanh %137 : vector<8x32xf32>
    %cst_46 = arith.constant 1.000000e+00 : f32
    %139 = vector.broadcast %cst_46 : f32 to vector<8x32xf32>
    %140 = arith.subf %139, %131 : vector<8x32xf32>
    %141 = arith.mulf %140, %138 : vector<8x32xf32>
    %142 = arith.mulf %131, %117 : vector<8x32xf32>
    %143 = arith.addf %141, %142 : vector<8x32xf32>
    %144 = arith.truncf %143 : vector<8x32xf32> to vector<8x32xbf16>
    %c32_47 = arith.constant 32 : index
    %c0_48 = arith.constant 0 : index
    %145 = vector.load %arg9[%c32_47, %c0_48] : memref<64x32xbf16, #tpu.memory_space<vmem>>, vector<8x32xbf16>
    tpu.vector_store %arg9[%c32_47, %c0_48], %144 {strides = array<i32>} : memref<64x32xbf16, #tpu.memory_space<vmem>>, vector<8x32xbf16>,
    %cst_49 = arith.constant dense<0.000000e+00> : vector<8x96xf32>
    %146 = tpu.matmul %144, %10, %cst_49 {dimension_numbers = #tpu.dot_dimension_numbers<[1], [0], [0], [1], [0, 0, 1, 1], [], []>} : vector<8x32xbf16>, vector<32x96xbf16>, vector<8x96xf32> -> vector<8x96xf32>
    %c40 = arith.constant 40 : index
    %c0_50 = arith.constant 0 : index
    %147 = vector.load %arg10[%c40, %c0_50] : memref<64x96xf32, #tpu.memory_space<vmem>>, vector<8x96xf32>
    %148 = vector.extract_strided_slice %147 {offsets = [0, 0], sizes = [8, 64], strides = [1, 1]} : vector<8x96xf32> to vector<8x64xf32>
    %149 = vector.extract_strided_slice %146 {offsets = [0, 0], sizes = [8, 64], strides = [1, 1]} : vector<8x96xf32> to vector<8x64xf32>
    %150 = arith.addf %148, %149 : vector<8x64xf32>
    %151 = arith.negf %150 : vector<8x64xf32>
    %152 = math.exp %151 : vector<8x64xf32>
    %cst_51 = arith.constant 1.000000e+00 : f32
    %153 = vector.broadcast %cst_51 : f32 to vector<8x64xf32>
    %154 = arith.addf %153, %152 : vector<8x64xf32>
    %155 = arith.divf %153, %154 : vector<8x64xf32>
    %156 = vector.extract_strided_slice %155 {offsets = [0, 0], sizes = [8, 32], strides = [1, 1]} : vector<8x64xf32> to vector<8x32xf32>
    %157 = vector.extract_strided_slice %155 {offsets = [0, 32], sizes = [8, 32], strides = [1, 1]} : vector<8x64xf32> to vector<8x32xf32>
    %158 = vector.extract_strided_slice %147 {offsets = [0, 64], sizes = [8, 32], strides = [1, 1]} : vector<8x96xf32> to vector<8x32xf32>
    %159 = vector.extract_strided_slice %146 {offsets = [0, 64], sizes = [8, 32], strides = [1, 1]} : vector<8x96xf32> to vector<8x32xf32>
    %160 = vector.broadcast %12 : vector<1x32xf32> to vector<8x32xf32>
    %161 = arith.addf %159, %160 : vector<8x32xf32>
    %162 = arith.mulf %156, %161 : vector<8x32xf32>
    %163 = arith.addf %158, %162 : vector<8x32xf32>
    %164 = math.tanh %163 : vector<8x32xf32>
    %cst_52 = arith.constant 1.000000e+00 : f32
    %165 = vector.broadcast %cst_52 : f32 to vector<8x32xf32>
    %166 = arith.subf %165, %157 : vector<8x32xf32>
    %167 = arith.mulf %166, %164 : vector<8x32xf32>
    %168 = arith.mulf %157, %143 : vector<8x32xf32>
    %169 = arith.addf %167, %168 : vector<8x32xf32>
    %170 = arith.truncf %169 : vector<8x32xf32> to vector<8x32xbf16>
    %c40_53 = arith.constant 40 : index
    %c0_54 = arith.constant 0 : index
    %171 = vector.load %arg9[%c40_53, %c0_54] : memref<64x32xbf16, #tpu.memory_space<vmem>>, vector<8x32xbf16>
    tpu.vector_store %arg9[%c40_53, %c0_54], %170 {strides = array<i32>} : memref<64x32xbf16, #tpu.memory_space<vmem>>, vector<8x32xbf16>,
    %cst_55 = arith.constant dense<0.000000e+00> : vector<8x96xf32>
    %172 = tpu.matmul %170, %10, %cst_55 {dimension_numbers = #tpu.dot_dimension_numbers<[1], [0], [0], [1], [0, 0, 1, 1], [], []>} : vector<8x32xbf16>, vector<32x96xbf16>, vector<8x96xf32> -> vector<8x96xf32>
    %c48 = arith.constant 48 : index
    %c0_56 = arith.constant 0 : index
    %173 = vector.load %arg10[%c48, %c0_56] : memref<64x96xf32, #tpu.memory_space<vmem>>, vector<8x96xf32>
    %174 = vector.extract_strided_slice %173 {offsets = [0, 0], sizes = [8, 64], strides = [1, 1]} : vector<8x96xf32> to vector<8x64xf32>
    %175 = vector.extract_strided_slice %172 {offsets = [0, 0], sizes = [8, 64], strides = [1, 1]} : vector<8x96xf32> to vector<8x64xf32>
    %176 = arith.addf %174, %175 : vector<8x64xf32>
    %177 = arith.negf %176 : vector<8x64xf32>
    %178 = math.exp %177 : vector<8x64xf32>
    %cst_57 = arith.constant 1.000000e+00 : f32
    %179 = vector.broadcast %cst_57 : f32 to vector<8x64xf32>
    %180 = arith.addf %179, %178 : vector<8x64xf32>
    %181 = arith.divf %179, %180 : vector<8x64xf32>
    %182 = vector.extract_strided_slice %181 {offsets = [0, 0], sizes = [8, 32], strides = [1, 1]} : vector<8x64xf32> to vector<8x32xf32>
    %183 = vector.extract_strided_slice %181 {offsets = [0, 32], sizes = [8, 32], strides = [1, 1]} : vector<8x64xf32> to vector<8x32xf32>
    %184 = vector.extract_strided_slice %173 {offsets = [0, 64], sizes = [8, 32], strides = [1, 1]} : vector<8x96xf32> to vector<8x32xf32>
    %185 = vector.extract_strided_slice %172 {offsets = [0, 64], sizes = [8, 32], strides = [1, 1]} : vector<8x96xf32> to vector<8x32xf32>
    %186 = vector.broadcast %12 : vector<1x32xf32> to vector<8x32xf32>
    %187 = arith.addf %185, %186 : vector<8x32xf32>
    %188 = arith.mulf %182, %187 : vector<8x32xf32>
    %189 = arith.addf %184, %188 : vector<8x32xf32>
    %190 = math.tanh %189 : vector<8x32xf32>
    %cst_58 = arith.constant 1.000000e+00 : f32
    %191 = vector.broadcast %cst_58 : f32 to vector<8x32xf32>
    %192 = arith.subf %191, %183 : vector<8x32xf32>
    %193 = arith.mulf %192, %190 : vector<8x32xf32>
    %194 = arith.mulf %183, %169 : vector<8x32xf32>
    %195 = arith.addf %193, %194 : vector<8x32xf32>
    %196 = arith.truncf %195 : vector<8x32xf32> to vector<8x32xbf16>
    %c48_59 = arith.constant 48 : index
    %c0_60 = arith.constant 0 : index
    %197 = vector.load %arg9[%c48_59, %c0_60] : memref<64x32xbf16, #tpu.memory_space<vmem>>, vector<8x32xbf16>
    tpu.vector_store %arg9[%c48_59, %c0_60], %196 {strides = array<i32>} : memref<64x32xbf16, #tpu.memory_space<vmem>>, vector<8x32xbf16>,
    %cst_61 = arith.constant dense<0.000000e+00> : vector<8x96xf32>
    %198 = tpu.matmul %196, %10, %cst_61 {dimension_numbers = #tpu.dot_dimension_numbers<[1], [0], [0], [1], [0, 0, 1, 1], [], []>} : vector<8x32xbf16>, vector<32x96xbf16>, vector<8x96xf32> -> vector<8x96xf32>
    %c56 = arith.constant 56 : index
    %c0_62 = arith.constant 0 : index
    %199 = vector.load %arg10[%c56, %c0_62] : memref<64x96xf32, #tpu.memory_space<vmem>>, vector<8x96xf32>
    %200 = vector.extract_strided_slice %199 {offsets = [0, 0], sizes = [8, 64], strides = [1, 1]} : vector<8x96xf32> to vector<8x64xf32>
    %201 = vector.extract_strided_slice %198 {offsets = [0, 0], sizes = [8, 64], strides = [1, 1]} : vector<8x96xf32> to vector<8x64xf32>
    %202 = arith.addf %200, %201 : vector<8x64xf32>
    %203 = arith.negf %202 : vector<8x64xf32>
    %204 = math.exp %203 : vector<8x64xf32>
    %cst_63 = arith.constant 1.000000e+00 : f32
    %205 = vector.broadcast %cst_63 : f32 to vector<8x64xf32>
    %206 = arith.addf %205, %204 : vector<8x64xf32>
    %207 = arith.divf %205, %206 : vector<8x64xf32>
    %208 = vector.extract_strided_slice %207 {offsets = [0, 0], sizes = [8, 32], strides = [1, 1]} : vector<8x64xf32> to vector<8x32xf32>
    %209 = vector.extract_strided_slice %207 {offsets = [0, 32], sizes = [8, 32], strides = [1, 1]} : vector<8x64xf32> to vector<8x32xf32>
    %210 = vector.extract_strided_slice %199 {offsets = [0, 64], sizes = [8, 32], strides = [1, 1]} : vector<8x96xf32> to vector<8x32xf32>
    %211 = vector.extract_strided_slice %198 {offsets = [0, 64], sizes = [8, 32], strides = [1, 1]} : vector<8x96xf32> to vector<8x32xf32>
    %212 = vector.broadcast %12 : vector<1x32xf32> to vector<8x32xf32>
    %213 = arith.addf %211, %212 : vector<8x32xf32>
    %214 = arith.mulf %208, %213 : vector<8x32xf32>
    %215 = arith.addf %210, %214 : vector<8x32xf32>
    %216 = math.tanh %215 : vector<8x32xf32>
    %cst_64 = arith.constant 1.000000e+00 : f32
    %217 = vector.broadcast %cst_64 : f32 to vector<8x32xf32>
    %218 = arith.subf %217, %209 : vector<8x32xf32>
    %219 = arith.mulf %218, %216 : vector<8x32xf32>
    %220 = arith.mulf %209, %195 : vector<8x32xf32>
    %221 = arith.addf %219, %220 : vector<8x32xf32>
    %222 = arith.truncf %221 : vector<8x32xf32> to vector<8x32xbf16>
    %c56_65 = arith.constant 56 : index
    %c0_66 = arith.constant 0 : index
    %223 = vector.load %arg9[%c56_65, %c0_66] : memref<64x32xbf16, #tpu.memory_space<vmem>>, vector<8x32xbf16>
    tpu.vector_store %arg9[%c56_65, %c0_66], %222 {strides = array<i32>} : memref<64x32xbf16, #tpu.memory_space<vmem>>, vector<8x32xbf16>,
    %c0_67 = arith.constant 0 : index
    %c0_68 = arith.constant 0 : index
    %224 = vector.load %arg9[%c0_67, %c0_68] : memref<64x32xbf16, #tpu.memory_space<vmem>>, vector<64x32xbf16>
    %c1 = arith.constant 1 : index
    %c0_69 = arith.constant 0 : index
    %c0_70 = arith.constant 0 : index
    %225 = vector.load %arg2[%c1, %c0_69, %c0_70] : memref<2x32x96xbf16, #tpu.memory_space<vmem>>, vector<1x32x96xbf16>
    %226 = vector.shape_cast %225 : vector<1x32x96xbf16> to vector<32x96xbf16>
    %cst_71 = arith.constant dense<0.000000e+00> : vector<64x96xf32>
    %227 = tpu.matmul %224, %226, %cst_71 {dimension_numbers = #tpu.dot_dimension_numbers<[1], [0], [0], [1], [0, 0, 1, 1], [], []>} : vector<64x32xbf16>, vector<32x96xbf16>, vector<64x96xf32> -> vector<64x96xf32>
    %c1_72 = arith.constant 1 : index
    %c0_73 = arith.constant 0 : index
    %c0_74 = arith.constant 0 : index
    %228 = vector.load %arg4[%c1_72, %c0_73, %c0_74] : memref<2x1x96xf32, #tpu.memory_space<vmem>>, vector<1x1x96xf32>
    %229 = vector.shape_cast %228 : vector<1x1x96xf32> to vector<1x96xf32>
    %230 = vector.broadcast %229 : vector<1x96xf32> to vector<64x96xf32>
    %231 = arith.addf %227, %230 : vector<64x96xf32>
    %c0_75 = arith.constant 0 : index
    %c0_76 = arith.constant 0 : index
    %232 = vector.load %arg10[%c0_75, %c0_76] : memref<64x96xf32, #tpu.memory_space<vmem>>, vector<64x96xf32>
    tpu.vector_store %arg10[%c0_75, %c0_76], %231 {strides = array<i32>} : memref<64x96xf32, #tpu.memory_space<vmem>>, vector<64x96xf32>,
    %c1_77 = arith.constant 1 : index
    %c0_78 = arith.constant 0 : index
    %c0_79 = arith.constant 0 : index
    %233 = vector.load %arg3[%c1_77, %c0_78, %c0_79] : memref<2x32x96xbf16, #tpu.memory_space<vmem>>, vector<1x32x96xbf16>
    %234 = vector.shape_cast %233 : vector<1x32x96xbf16> to vector<32x96xbf16>
    %c1_80 = arith.constant 1 : index
    %c0_81 = arith.constant 0 : index
    %c0_82 = arith.constant 0 : index
    %235 = vector.load %arg5[%c1_80, %c0_81, %c0_82] : memref<2x1x32xf32, #tpu.memory_space<vmem>>, vector<1x1x32xf32>
    %236 = vector.shape_cast %235 : vector<1x1x32xf32> to vector<1x32xf32>
    %c1_83 = arith.constant 1 : index
    %c0_84 = arith.constant 0 : index
    %c0_85 = arith.constant 0 : index
    %237 = vector.load %arg1[%c1_83, %c0_84, %c0_85] : memref<2x8x32xf32, #tpu.memory_space<vmem>>, vector<1x8x32xf32>
    %238 = vector.shape_cast %237 : vector<1x8x32xf32> to vector<8x32xf32>
    %239 = arith.truncf %238 : vector<8x32xf32> to vector<8x32xbf16>
    %cst_86 = arith.constant dense<0.000000e+00> : vector<8x96xf32>
    %240 = tpu.matmul %239, %234, %cst_86 {dimension_numbers = #tpu.dot_dimension_numbers<[1], [0], [0], [1], [0, 0, 1, 1], [], []>} : vector<8x32xbf16>, vector<32x96xbf16>, vector<8x96xf32> -> vector<8x96xf32>
    %c0_87 = arith.constant 0 : index
    %c0_88 = arith.constant 0 : index
    %241 = vector.load %arg10[%c0_87, %c0_88] : memref<64x96xf32, #tpu.memory_space<vmem>>, vector<8x96xf32>
    %242 = vector.extract_strided_slice %241 {offsets = [0, 0], sizes = [8, 64], strides = [1, 1]} : vector<8x96xf32> to vector<8x64xf32>
    %243 = vector.extract_strided_slice %240 {offsets = [0, 0], sizes = [8, 64], strides = [1, 1]} : vector<8x96xf32> to vector<8x64xf32>
    %244 = arith.addf %242, %243 : vector<8x64xf32>
    %245 = arith.negf %244 : vector<8x64xf32>
    %246 = math.exp %245 : vector<8x64xf32>
    %cst_89 = arith.constant 1.000000e+00 : f32
    %247 = vector.broadcast %cst_89 : f32 to vector<8x64xf32>
    %248 = arith.addf %247, %246 : vector<8x64xf32>
    %249 = arith.divf %247, %248 : vector<8x64xf32>
    %250 = vector.extract_strided_slice %249 {offsets = [0, 0], sizes = [8, 32], strides = [1, 1]} : vector<8x64xf32> to vector<8x32xf32>
    %251 = vector.extract_strided_slice %249 {offsets = [0, 32], sizes = [8, 32], strides = [1, 1]} : vector<8x64xf32> to vector<8x32xf32>
    %252 = vector.extract_strided_slice %241 {offsets = [0, 64], sizes = [8, 32], strides = [1, 1]} : vector<8x96xf32> to vector<8x32xf32>
    %253 = vector.extract_strided_slice %240 {offsets = [0, 64], sizes = [8, 32], strides = [1, 1]} : vector<8x96xf32> to vector<8x32xf32>
    %254 = vector.broadcast %236 : vector<1x32xf32> to vector<8x32xf32>
    %255 = arith.addf %253, %254 : vector<8x32xf32>
    %256 = arith.mulf %250, %255 : vector<8x32xf32>
    %257 = arith.addf %252, %256 : vector<8x32xf32>
    %258 = math.tanh %257 : vector<8x32xf32>
    %cst_90 = arith.constant 1.000000e+00 : f32
    %259 = vector.broadcast %cst_90 : f32 to vector<8x32xf32>
    %260 = arith.subf %259, %251 : vector<8x32xf32>
    %261 = arith.mulf %260, %258 : vector<8x32xf32>
    %262 = arith.mulf %251, %238 : vector<8x32xf32>
    %263 = arith.addf %261, %262 : vector<8x32xf32>
    %264 = arith.truncf %263 : vector<8x32xf32> to vector<8x32xbf16>
    %c0_91 = arith.constant 0 : index
    %c0_92 = arith.constant 0 : index
    %265 = vector.load %arg9[%c0_91, %c0_92] : memref<64x32xbf16, #tpu.memory_space<vmem>>, vector<8x32xbf16>
    tpu.vector_store %arg9[%c0_91, %c0_92], %264 {strides = array<i32>} : memref<64x32xbf16, #tpu.memory_space<vmem>>, vector<8x32xbf16>,
    %cst_93 = arith.constant dense<0.000000e+00> : vector<8x96xf32>
    %266 = tpu.matmul %264, %234, %cst_93 {dimension_numbers = #tpu.dot_dimension_numbers<[1], [0], [0], [1], [0, 0, 1, 1], [], []>} : vector<8x32xbf16>, vector<32x96xbf16>, vector<8x96xf32> -> vector<8x96xf32>
    %c8_94 = arith.constant 8 : index
    %c0_95 = arith.constant 0 : index
    %267 = vector.load %arg10[%c8_94, %c0_95] : memref<64x96xf32, #tpu.memory_space<vmem>>, vector<8x96xf32>
    %268 = vector.extract_strided_slice %267 {offsets = [0, 0], sizes = [8, 64], strides = [1, 1]} : vector<8x96xf32> to vector<8x64xf32>
    %269 = vector.extract_strided_slice %266 {offsets = [0, 0], sizes = [8, 64], strides = [1, 1]} : vector<8x96xf32> to vector<8x64xf32>
    %270 = arith.addf %268, %269 : vector<8x64xf32>
    %271 = arith.negf %270 : vector<8x64xf32>
    %272 = math.exp %271 : vector<8x64xf32>
    %cst_96 = arith.constant 1.000000e+00 : f32
    %273 = vector.broadcast %cst_96 : f32 to vector<8x64xf32>
    %274 = arith.addf %273, %272 : vector<8x64xf32>
    %275 = arith.divf %273, %274 : vector<8x64xf32>
    %276 = vector.extract_strided_slice %275 {offsets = [0, 0], sizes = [8, 32], strides = [1, 1]} : vector<8x64xf32> to vector<8x32xf32>
    %277 = vector.extract_strided_slice %275 {offsets = [0, 32], sizes = [8, 32], strides = [1, 1]} : vector<8x64xf32> to vector<8x32xf32>
    %278 = vector.extract_strided_slice %267 {offsets = [0, 64], sizes = [8, 32], strides = [1, 1]} : vector<8x96xf32> to vector<8x32xf32>
    %279 = vector.extract_strided_slice %266 {offsets = [0, 64], sizes = [8, 32], strides = [1, 1]} : vector<8x96xf32> to vector<8x32xf32>
    %280 = vector.broadcast %236 : vector<1x32xf32> to vector<8x32xf32>
    %281 = arith.addf %279, %280 : vector<8x32xf32>
    %282 = arith.mulf %276, %281 : vector<8x32xf32>
    %283 = arith.addf %278, %282 : vector<8x32xf32>
    %284 = math.tanh %283 : vector<8x32xf32>
    %cst_97 = arith.constant 1.000000e+00 : f32
    %285 = vector.broadcast %cst_97 : f32 to vector<8x32xf32>
    %286 = arith.subf %285, %277 : vector<8x32xf32>
    %287 = arith.mulf %286, %284 : vector<8x32xf32>
    %288 = arith.mulf %277, %263 : vector<8x32xf32>
    %289 = arith.addf %287, %288 : vector<8x32xf32>
    %290 = arith.truncf %289 : vector<8x32xf32> to vector<8x32xbf16>
    %c8_98 = arith.constant 8 : index
    %c0_99 = arith.constant 0 : index
    %291 = vector.load %arg9[%c8_98, %c0_99] : memref<64x32xbf16, #tpu.memory_space<vmem>>, vector<8x32xbf16>
    tpu.vector_store %arg9[%c8_98, %c0_99], %290 {strides = array<i32>} : memref<64x32xbf16, #tpu.memory_space<vmem>>, vector<8x32xbf16>,
    %cst_100 = arith.constant dense<0.000000e+00> : vector<8x96xf32>
    %292 = tpu.matmul %290, %234, %cst_100 {dimension_numbers = #tpu.dot_dimension_numbers<[1], [0], [0], [1], [0, 0, 1, 1], [], []>} : vector<8x32xbf16>, vector<32x96xbf16>, vector<8x96xf32> -> vector<8x96xf32>
    %c16_101 = arith.constant 16 : index
    %c0_102 = arith.constant 0 : index
    %293 = vector.load %arg10[%c16_101, %c0_102] : memref<64x96xf32, #tpu.memory_space<vmem>>, vector<8x96xf32>
    %294 = vector.extract_strided_slice %293 {offsets = [0, 0], sizes = [8, 64], strides = [1, 1]} : vector<8x96xf32> to vector<8x64xf32>
    %295 = vector.extract_strided_slice %292 {offsets = [0, 0], sizes = [8, 64], strides = [1, 1]} : vector<8x96xf32> to vector<8x64xf32>
    %296 = arith.addf %294, %295 : vector<8x64xf32>
    %297 = arith.negf %296 : vector<8x64xf32>
    %298 = math.exp %297 : vector<8x64xf32>
    %cst_103 = arith.constant 1.000000e+00 : f32
    %299 = vector.broadcast %cst_103 : f32 to vector<8x64xf32>
    %300 = arith.addf %299, %298 : vector<8x64xf32>
    %301 = arith.divf %299, %300 : vector<8x64xf32>
    %302 = vector.extract_strided_slice %301 {offsets = [0, 0], sizes = [8, 32], strides = [1, 1]} : vector<8x64xf32> to vector<8x32xf32>
    %303 = vector.extract_strided_slice %301 {offsets = [0, 32], sizes = [8, 32], strides = [1, 1]} : vector<8x64xf32> to vector<8x32xf32>
    %304 = vector.extract_strided_slice %293 {offsets = [0, 64], sizes = [8, 32], strides = [1, 1]} : vector<8x96xf32> to vector<8x32xf32>
    %305 = vector.extract_strided_slice %292 {offsets = [0, 64], sizes = [8, 32], strides = [1, 1]} : vector<8x96xf32> to vector<8x32xf32>
    %306 = vector.broadcast %236 : vector<1x32xf32> to vector<8x32xf32>
    %307 = arith.addf %305, %306 : vector<8x32xf32>
    %308 = arith.mulf %302, %307 : vector<8x32xf32>
    %309 = arith.addf %304, %308 : vector<8x32xf32>
    %310 = math.tanh %309 : vector<8x32xf32>
    %cst_104 = arith.constant 1.000000e+00 : f32
    %311 = vector.broadcast %cst_104 : f32 to vector<8x32xf32>
    %312 = arith.subf %311, %303 : vector<8x32xf32>
    %313 = arith.mulf %312, %310 : vector<8x32xf32>
    %314 = arith.mulf %303, %289 : vector<8x32xf32>
    %315 = arith.addf %313, %314 : vector<8x32xf32>
    %316 = arith.truncf %315 : vector<8x32xf32> to vector<8x32xbf16>
    %c16_105 = arith.constant 16 : index
    %c0_106 = arith.constant 0 : index
    %317 = vector.load %arg9[%c16_105, %c0_106] : memref<64x32xbf16, #tpu.memory_space<vmem>>, vector<8x32xbf16>
    tpu.vector_store %arg9[%c16_105, %c0_106], %316 {strides = array<i32>} : memref<64x32xbf16, #tpu.memory_space<vmem>>, vector<8x32xbf16>,
    %cst_107 = arith.constant dense<0.000000e+00> : vector<8x96xf32>
    %318 = tpu.matmul %316, %234, %cst_107 {dimension_numbers = #tpu.dot_dimension_numbers<[1], [0], [0], [1], [0, 0, 1, 1], [], []>} : vector<8x32xbf16>, vector<32x96xbf16>, vector<8x96xf32> -> vector<8x96xf32>
    %c24_108 = arith.constant 24 : index
    %c0_109 = arith.constant 0 : index
    %319 = vector.load %arg10[%c24_108, %c0_109] : memref<64x96xf32, #tpu.memory_space<vmem>>, vector<8x96xf32>
    %320 = vector.extract_strided_slice %319 {offsets = [0, 0], sizes = [8, 64], strides = [1, 1]} : vector<8x96xf32> to vector<8x64xf32>
    %321 = vector.extract_strided_slice %318 {offsets = [0, 0], sizes = [8, 64], strides = [1, 1]} : vector<8x96xf32> to vector<8x64xf32>
    %322 = arith.addf %320, %321 : vector<8x64xf32>
    %323 = arith.negf %322 : vector<8x64xf32>
    %324 = math.exp %323 : vector<8x64xf32>
    %cst_110 = arith.constant 1.000000e+00 : f32
    %325 = vector.broadcast %cst_110 : f32 to vector<8x64xf32>
    %326 = arith.addf %325, %324 : vector<8x64xf32>
    %327 = arith.divf %325, %326 : vector<8x64xf32>
    %328 = vector.extract_strided_slice %327 {offsets = [0, 0], sizes = [8, 32], strides = [1, 1]} : vector<8x64xf32> to vector<8x32xf32>
    %329 = vector.extract_strided_slice %327 {offsets = [0, 32], sizes = [8, 32], strides = [1, 1]} : vector<8x64xf32> to vector<8x32xf32>
    %330 = vector.extract_strided_slice %319 {offsets = [0, 64], sizes = [8, 32], strides = [1, 1]} : vector<8x96xf32> to vector<8x32xf32>
    %331 = vector.extract_strided_slice %318 {offsets = [0, 64], sizes = [8, 32], strides = [1, 1]} : vector<8x96xf32> to vector<8x32xf32>
    %332 = vector.broadcast %236 : vector<1x32xf32> to vector<8x32xf32>
    %333 = arith.addf %331, %332 : vector<8x32xf32>
    %334 = arith.mulf %328, %333 : vector<8x32xf32>
    %335 = arith.addf %330, %334 : vector<8x32xf32>
    %336 = math.tanh %335 : vector<8x32xf32>
    %cst_111 = arith.constant 1.000000e+00 : f32
    %337 = vector.broadcast %cst_111 : f32 to vector<8x32xf32>
    %338 = arith.subf %337, %329 : vector<8x32xf32>
    %339 = arith.mulf %338, %336 : vector<8x32xf32>
    %340 = arith.mulf %329, %315 : vector<8x32xf32>
    %341 = arith.addf %339, %340 : vector<8x32xf32>
    %342 = arith.truncf %341 : vector<8x32xf32> to vector<8x32xbf16>
    %c24_112 = arith.constant 24 : index
    %c0_113 = arith.constant 0 : index
    %343 = vector.load %arg9[%c24_112, %c0_113] : memref<64x32xbf16, #tpu.memory_space<vmem>>, vector<8x32xbf16>
    tpu.vector_store %arg9[%c24_112, %c0_113], %342 {strides = array<i32>} : memref<64x32xbf16, #tpu.memory_space<vmem>>, vector<8x32xbf16>,
    %cst_114 = arith.constant dense<0.000000e+00> : vector<8x96xf32>
    %344 = tpu.matmul %342, %234, %cst_114 {dimension_numbers = #tpu.dot_dimension_numbers<[1], [0], [0], [1], [0, 0, 1, 1], [], []>} : vector<8x32xbf16>, vector<32x96xbf16>, vector<8x96xf32> -> vector<8x96xf32>
    %c32_115 = arith.constant 32 : index
    %c0_116 = arith.constant 0 : index
    %345 = vector.load %arg10[%c32_115, %c0_116] : memref<64x96xf32, #tpu.memory_space<vmem>>, vector<8x96xf32>
    %346 = vector.extract_strided_slice %345 {offsets = [0, 0], sizes = [8, 64], strides = [1, 1]} : vector<8x96xf32> to vector<8x64xf32>
    %347 = vector.extract_strided_slice %344 {offsets = [0, 0], sizes = [8, 64], strides = [1, 1]} : vector<8x96xf32> to vector<8x64xf32>
    %348 = arith.addf %346, %347 : vector<8x64xf32>
    %349 = arith.negf %348 : vector<8x64xf32>
    %350 = math.exp %349 : vector<8x64xf32>
    %cst_117 = arith.constant 1.000000e+00 : f32
    %351 = vector.broadcast %cst_117 : f32 to vector<8x64xf32>
    %352 = arith.addf %351, %350 : vector<8x64xf32>
    %353 = arith.divf %351, %352 : vector<8x64xf32>
    %354 = vector.extract_strided_slice %353 {offsets = [0, 0], sizes = [8, 32], strides = [1, 1]} : vector<8x64xf32> to vector<8x32xf32>
    %355 = vector.extract_strided_slice %353 {offsets = [0, 32], sizes = [8, 32], strides = [1, 1]} : vector<8x64xf32> to vector<8x32xf32>
    %356 = vector.extract_strided_slice %345 {offsets = [0, 64], sizes = [8, 32], strides = [1, 1]} : vector<8x96xf32> to vector<8x32xf32>
    %357 = vector.extract_strided_slice %344 {offsets = [0, 64], sizes = [8, 32], strides = [1, 1]} : vector<8x96xf32> to vector<8x32xf32>
    %358 = vector.broadcast %236 : vector<1x32xf32> to vector<8x32xf32>
    %359 = arith.addf %357, %358 : vector<8x32xf32>
    %360 = arith.mulf %354, %359 : vector<8x32xf32>
    %361 = arith.addf %356, %360 : vector<8x32xf32>
    %362 = math.tanh %361 : vector<8x32xf32>
    %cst_118 = arith.constant 1.000000e+00 : f32
    %363 = vector.broadcast %cst_118 : f32 to vector<8x32xf32>
    %364 = arith.subf %363, %355 : vector<8x32xf32>
    %365 = arith.mulf %364, %362 : vector<8x32xf32>
    %366 = arith.mulf %355, %341 : vector<8x32xf32>
    %367 = arith.addf %365, %366 : vector<8x32xf32>
    %368 = arith.truncf %367 : vector<8x32xf32> to vector<8x32xbf16>
    %c32_119 = arith.constant 32 : index
    %c0_120 = arith.constant 0 : index
    %369 = vector.load %arg9[%c32_119, %c0_120] : memref<64x32xbf16, #tpu.memory_space<vmem>>, vector<8x32xbf16>
    tpu.vector_store %arg9[%c32_119, %c0_120], %368 {strides = array<i32>} : memref<64x32xbf16, #tpu.memory_space<vmem>>, vector<8x32xbf16>,
    %cst_121 = arith.constant dense<0.000000e+00> : vector<8x96xf32>
    %370 = tpu.matmul %368, %234, %cst_121 {dimension_numbers = #tpu.dot_dimension_numbers<[1], [0], [0], [1], [0, 0, 1, 1], [], []>} : vector<8x32xbf16>, vector<32x96xbf16>, vector<8x96xf32> -> vector<8x96xf32>
    %c40_122 = arith.constant 40 : index
    %c0_123 = arith.constant 0 : index
    %371 = vector.load %arg10[%c40_122, %c0_123] : memref<64x96xf32, #tpu.memory_space<vmem>>, vector<8x96xf32>
    %372 = vector.extract_strided_slice %371 {offsets = [0, 0], sizes = [8, 64], strides = [1, 1]} : vector<8x96xf32> to vector<8x64xf32>
    %373 = vector.extract_strided_slice %370 {offsets = [0, 0], sizes = [8, 64], strides = [1, 1]} : vector<8x96xf32> to vector<8x64xf32>
    %374 = arith.addf %372, %373 : vector<8x64xf32>
    %375 = arith.negf %374 : vector<8x64xf32>
    %376 = math.exp %375 : vector<8x64xf32>
    %cst_124 = arith.constant 1.000000e+00 : f32
    %377 = vector.broadcast %cst_124 : f32 to vector<8x64xf32>
    %378 = arith.addf %377, %376 : vector<8x64xf32>
    %379 = arith.divf %377, %378 : vector<8x64xf32>
    %380 = vector.extract_strided_slice %379 {offsets = [0, 0], sizes = [8, 32], strides = [1, 1]} : vector<8x64xf32> to vector<8x32xf32>
    %381 = vector.extract_strided_slice %379 {offsets = [0, 32], sizes = [8, 32], strides = [1, 1]} : vector<8x64xf32> to vector<8x32xf32>
    %382 = vector.extract_strided_slice %371 {offsets = [0, 64], sizes = [8, 32], strides = [1, 1]} : vector<8x96xf32> to vector<8x32xf32>
    %383 = vector.extract_strided_slice %370 {offsets = [0, 64], sizes = [8, 32], strides = [1, 1]} : vector<8x96xf32> to vector<8x32xf32>
    %384 = vector.broadcast %236 : vector<1x32xf32> to vector<8x32xf32>
    %385 = arith.addf %383, %384 : vector<8x32xf32>
    %386 = arith.mulf %380, %385 : vector<8x32xf32>
    %387 = arith.addf %382, %386 : vector<8x32xf32>
    %388 = math.tanh %387 : vector<8x32xf32>
    %cst_125 = arith.constant 1.000000e+00 : f32
    %389 = vector.broadcast %cst_125 : f32 to vector<8x32xf32>
    %390 = arith.subf %389, %381 : vector<8x32xf32>
    %391 = arith.mulf %390, %388 : vector<8x32xf32>
    %392 = arith.mulf %381, %367 : vector<8x32xf32>
    %393 = arith.addf %391, %392 : vector<8x32xf32>
    %394 = arith.truncf %393 : vector<8x32xf32> to vector<8x32xbf16>
    %c40_126 = arith.constant 40 : index
    %c0_127 = arith.constant 0 : index
    %395 = vector.load %arg9[%c40_126, %c0_127] : memref<64x32xbf16, #tpu.memory_space<vmem>>, vector<8x32xbf16>
    tpu.vector_store %arg9[%c40_126, %c0_127], %394 {strides = array<i32>} : memref<64x32xbf16, #tpu.memory_space<vmem>>, vector<8x32xbf16>,
    %cst_128 = arith.constant dense<0.000000e+00> : vector<8x96xf32>
    %396 = tpu.matmul %394, %234, %cst_128 {dimension_numbers = #tpu.dot_dimension_numbers<[1], [0], [0], [1], [0, 0, 1, 1], [], []>} : vector<8x32xbf16>, vector<32x96xbf16>, vector<8x96xf32> -> vector<8x96xf32>
    %c48_129 = arith.constant 48 : index
    %c0_130 = arith.constant 0 : index
    %397 = vector.load %arg10[%c48_129, %c0_130] : memref<64x96xf32, #tpu.memory_space<vmem>>, vector<8x96xf32>
    %398 = vector.extract_strided_slice %397 {offsets = [0, 0], sizes = [8, 64], strides = [1, 1]} : vector<8x96xf32> to vector<8x64xf32>
    %399 = vector.extract_strided_slice %396 {offsets = [0, 0], sizes = [8, 64], strides = [1, 1]} : vector<8x96xf32> to vector<8x64xf32>
    %400 = arith.addf %398, %399 : vector<8x64xf32>
    %401 = arith.negf %400 : vector<8x64xf32>
    %402 = math.exp %401 : vector<8x64xf32>
    %cst_131 = arith.constant 1.000000e+00 : f32
    %403 = vector.broadcast %cst_131 : f32 to vector<8x64xf32>
    %404 = arith.addf %403, %402 : vector<8x64xf32>
    %405 = arith.divf %403, %404 : vector<8x64xf32>
    %406 = vector.extract_strided_slice %405 {offsets = [0, 0], sizes = [8, 32], strides = [1, 1]} : vector<8x64xf32> to vector<8x32xf32>
    %407 = vector.extract_strided_slice %405 {offsets = [0, 32], sizes = [8, 32], strides = [1, 1]} : vector<8x64xf32> to vector<8x32xf32>
    %408 = vector.extract_strided_slice %397 {offsets = [0, 64], sizes = [8, 32], strides = [1, 1]} : vector<8x96xf32> to vector<8x32xf32>
    %409 = vector.extract_strided_slice %396 {offsets = [0, 64], sizes = [8, 32], strides = [1, 1]} : vector<8x96xf32> to vector<8x32xf32>
    %410 = vector.broadcast %236 : vector<1x32xf32> to vector<8x32xf32>
    %411 = arith.addf %409, %410 : vector<8x32xf32>
    %412 = arith.mulf %406, %411 : vector<8x32xf32>
    %413 = arith.addf %408, %412 : vector<8x32xf32>
    %414 = math.tanh %413 : vector<8x32xf32>
    %cst_132 = arith.constant 1.000000e+00 : f32
    %415 = vector.broadcast %cst_132 : f32 to vector<8x32xf32>
    %416 = arith.subf %415, %407 : vector<8x32xf32>
    %417 = arith.mulf %416, %414 : vector<8x32xf32>
    %418 = arith.mulf %407, %393 : vector<8x32xf32>
    %419 = arith.addf %417, %418 : vector<8x32xf32>
    %420 = arith.truncf %419 : vector<8x32xf32> to vector<8x32xbf16>
    %c48_133 = arith.constant 48 : index
    %c0_134 = arith.constant 0 : index
    %421 = vector.load %arg9[%c48_133, %c0_134] : memref<64x32xbf16, #tpu.memory_space<vmem>>, vector<8x32xbf16>
    tpu.vector_store %arg9[%c48_133, %c0_134], %420 {strides = array<i32>} : memref<64x32xbf16, #tpu.memory_space<vmem>>, vector<8x32xbf16>,
    %cst_135 = arith.constant dense<0.000000e+00> : vector<8x96xf32>
    %422 = tpu.matmul %420, %234, %cst_135 {dimension_numbers = #tpu.dot_dimension_numbers<[1], [0], [0], [1], [0, 0, 1, 1], [], []>} : vector<8x32xbf16>, vector<32x96xbf16>, vector<8x96xf32> -> vector<8x96xf32>
    %c56_136 = arith.constant 56 : index
    %c0_137 = arith.constant 0 : index
    %423 = vector.load %arg10[%c56_136, %c0_137] : memref<64x96xf32, #tpu.memory_space<vmem>>, vector<8x96xf32>
    %424 = vector.extract_strided_slice %423 {offsets = [0, 0], sizes = [8, 64], strides = [1, 1]} : vector<8x96xf32> to vector<8x64xf32>
    %425 = vector.extract_strided_slice %422 {offsets = [0, 0], sizes = [8, 64], strides = [1, 1]} : vector<8x96xf32> to vector<8x64xf32>
    %426 = arith.addf %424, %425 : vector<8x64xf32>
    %427 = arith.negf %426 : vector<8x64xf32>
    %428 = math.exp %427 : vector<8x64xf32>
    %cst_138 = arith.constant 1.000000e+00 : f32
    %429 = vector.broadcast %cst_138 : f32 to vector<8x64xf32>
    %430 = arith.addf %429, %428 : vector<8x64xf32>
    %431 = arith.divf %429, %430 : vector<8x64xf32>
    %432 = vector.extract_strided_slice %431 {offsets = [0, 0], sizes = [8, 32], strides = [1, 1]} : vector<8x64xf32> to vector<8x32xf32>
    %433 = vector.extract_strided_slice %431 {offsets = [0, 32], sizes = [8, 32], strides = [1, 1]} : vector<8x64xf32> to vector<8x32xf32>
    %434 = vector.extract_strided_slice %423 {offsets = [0, 64], sizes = [8, 32], strides = [1, 1]} : vector<8x96xf32> to vector<8x32xf32>
    %435 = vector.extract_strided_slice %422 {offsets = [0, 64], sizes = [8, 32], strides = [1, 1]} : vector<8x96xf32> to vector<8x32xf32>
    %436 = vector.broadcast %236 : vector<1x32xf32> to vector<8x32xf32>
    %437 = arith.addf %435, %436 : vector<8x32xf32>
    %438 = arith.mulf %432, %437 : vector<8x32xf32>
    %439 = arith.addf %434, %438 : vector<8x32xf32>
    %440 = math.tanh %439 : vector<8x32xf32>
    %cst_139 = arith.constant 1.000000e+00 : f32
    %441 = vector.broadcast %cst_139 : f32 to vector<8x32xf32>
    %442 = arith.subf %441, %433 : vector<8x32xf32>
    %443 = arith.mulf %442, %440 : vector<8x32xf32>
    %444 = arith.mulf %433, %419 : vector<8x32xf32>
    %445 = arith.addf %443, %444 : vector<8x32xf32>
    %446 = arith.truncf %445 : vector<8x32xf32> to vector<8x32xbf16>
    %c56_140 = arith.constant 56 : index
    %c0_141 = arith.constant 0 : index
    %447 = vector.load %arg9[%c56_140, %c0_141] : memref<64x32xbf16, #tpu.memory_space<vmem>>, vector<8x32xbf16>
    tpu.vector_store %arg9[%c56_140, %c0_141], %446 {strides = array<i32>} : memref<64x32xbf16, #tpu.memory_space<vmem>>, vector<8x32xbf16>,
    %c0_142 = arith.constant 0 : index
    %c0_143 = arith.constant 0 : index
    %448 = vector.load %arg9[%c0_142, %c0_143] : memref<64x32xbf16, #tpu.memory_space<vmem>>, vector<64x32xbf16>
    %c0_144 = arith.constant 0 : index
    %c0_145 = arith.constant 0 : index
    %449 = vector.load %arg6[%c0_144, %c0_145] : memref<32x128xbf16, #tpu.memory_space<vmem>>, vector<32x128xbf16>
    %cst_146 = arith.constant dense<0.000000e+00> : vector<64x128xf32>
    %450 = tpu.matmul %448, %449, %cst_146 {dimension_numbers = #tpu.dot_dimension_numbers<[1], [0], [0], [1], [0, 0, 1, 1], [], []>} : vector<64x32xbf16>, vector<32x128xbf16>, vector<64x128xf32> -> vector<64x128xf32>
    %c0_147 = arith.constant 0 : index
    %c0_148 = arith.constant 0 : index
    %451 = vector.load %arg7[%c0_147, %c0_148] : memref<1x128xf32, #tpu.memory_space<vmem>>, vector<1x128xf32>
    %452 = vector.broadcast %451 : vector<1x128xf32> to vector<64x128xf32>
    %453 = arith.addf %450, %452 : vector<64x128xf32>
    %c0_149 = arith.constant 0 : index
    %c0_150 = arith.constant 0 : index
    %454 = vector.load %arg8[%c0_149, %c0_150] : memref<64x128xf32, #tpu.memory_space<vmem>>, vector<64x128xf32>
    tpu.vector_store %arg8[%c0_149, %c0_150], %453 {strides = array<i32>} : memref<64x128xf32, #tpu.memory_space<vmem>>, vector<64x128xf32>,
    return
  }
}

</mosaic_0001>

<llo_original>
// kernel: _lambda_.1
$region0: #{_lambda_.1}
  #allocation0 [shape = 'u32[]', space=smem, size = 0x4, offset = 0x4, fixed_abs, tag = 'smem constant byte address 0x4 - core index']
  #allocation1 [shape = 'u32[144,128]{1,0:T(1,128)}', space=vmem, size = 0x12000, scoped, tag = 'internal scratch']
  #allocation2 [shape = 'bf16[64,32]{1,0:T(8,128)(2,1)}', space=vmem, size = 0x4000, scoped, tag = 'scratch operand']
  #allocation3 [shape = 'f32[64,96]{1,0:T(8,128)}', space=vmem, size = 0x8000, scoped, tag = 'scratch operand']
  %s0 = inlined_call_operand.vmem [shape: bf16[64,32], index: 0, kind: input, shape index: {}]
  %s1 = inlined_call_operand.vmem [shape: f32[2,8,32], index: 1, kind: input, shape index: {}]
  %s2 = inlined_call_operand.vmem [shape: bf16[2,32,96], index: 2, kind: input, shape index: {}]
  %s3 = inlined_call_operand.vmem [shape: bf16[2,32,96], index: 3, kind: input, shape index: {}]
  %s4 = inlined_call_operand.vmem [shape: f32[2,1,96], index: 4, kind: input, shape index: {}]
  %s5 = inlined_call_operand.vmem [shape: f32[2,1,32], index: 5, kind: input, shape index: {}]
  %s6 = inlined_call_operand.vmem [shape: bf16[32,128], index: 6, kind: input, shape index: {}]
  %s7 = inlined_call_operand.vmem [shape: f32[1,128], index: 7, kind: input, shape index: {}]
  %s8 = inlined_call_operand.vmem [shape: f32[64,128], index: 8, kind: output, shape index: {}]
  %s9 = sld [smem:[#allocation0]]
  $region42: #{_lambda_.1} parent=0
    _
  %s11 = ssub.s32 1, %s9
  %s12 = scalar_select 0, %s11, %s9
  // Predicated region
  $region2: #{_lambda_.1} parent=0 // pred_check
    _
  $region3: #{_lambda_.1} parent=0 // pred_check_branch
    %14 = sbr.rel (0) target = $region5
  $region4: #{_lambda_.1} parent=0 // pred_region
    _
  $region5: #{_lambda_.1} parent=0 // pred_fallthru
    _
  // Predicated region
  $region6: #{_lambda_.1} parent=0 // pred_check
    _
  $region7: #{_lambda_.1} parent=0 // pred_check_branch
    %16 = sbr.rel (0) target = $region9
  $region8: #{_lambda_.1} parent=0 // pred_region
    _
  $region9: #{_lambda_.1} parent=0 // pred_fallthru
    _
  // Predicated region
  $region10: #{_lambda_.1} parent=0 // pred_check
    _
  $region11: #{_lambda_.1} parent=0 // pred_check_branch
    %18 = sbr.rel (0) target = $region13
  $region12: #{_lambda_.1} parent=0 // pred_region
    _
  $region13: #{_lambda_.1} parent=0 // pred_fallthru
    _
  // Predicated region
  $region14: #{_lambda_.1} parent=0 // pred_check
    _
  $region15: #{_lambda_.1} parent=0 // pred_check_branch
    %20 = sbr.rel (0) target = $region17
  $region16: #{_lambda_.1} parent=0 // pred_region
    _
  $region17: #{_lambda_.1} parent=0 // pred_fallthru
    _
  // Predicated region
  $region18: #{_lambda_.1} parent=0 // pred_check
    _
  $region19: #{_lambda_.1} parent=0 // pred_check_branch
    %22 = sbr.rel (0) target = $region21
  $region20: #{_lambda_.1} parent=0 // pred_region
    _
  $region21: #{_lambda_.1} parent=0 // pred_fallthru
    _
  // Predicated region
  $region22: #{_lambda_.1} parent=0 // pred_check
    _
  $region23: #{_lambda_.1} parent=0 // pred_check_branch
    %24 = sbr.rel (0) target = $region25
  $region24: #{_lambda_.1} parent=0 // pred_region
    _
  $region25: #{_lambda_.1} parent=0 // pred_fallthru
    _
  // Predicated region
  $region26: #{_lambda_.1} parent=0 // pred_check
    _
  $region27: #{_lambda_.1} parent=0 // pred_check_branch
    %26 = sbr.rel (0) target = $region29
  $region28: #{_lambda_.1} parent=0 // pred_region
    _
  $region29: #{_lambda_.1} parent=0 // pred_fallthru
    _
  // Predicated region
  $region30: #{_lambda_.1} parent=0 // pred_check
    _
  $region31: #{_lambda_.1} parent=0 // pred_check_branch
    %28 = sbr.rel (0) target = $region33
  $region32: #{_lambda_.1} parent=0 // pred_region
    _
  $region33: #{_lambda_.1} parent=0 // pred_fallthru
    _
  %v30 = vld [vmem:[%s0] sm:$0xf]
  %v31 = vld [vmem:[%s0 + $0x4] sm:$0xf]
  %v32 = vld [vmem:[%s0 + $0x8] sm:$0xf]
  %v33 = vld [vmem:[%s0 + $0xc] sm:$0xf]
  %v34 = vld [vmem:[%s0 + $0x10] sm:$0xf]
  %v35 = vld [vmem:[%s0 + $0x14] sm:$0xf]
  %v36 = vld [vmem:[%s0 + $0x18] sm:$0xf]
  %v37 = vld [vmem:[%s0 + $0x1c] sm:$0xf]
  %v38 = vld [vmem:[%s2] sm:$0xf]
  %v39 = vld [vmem:[%s2 + $0x4] sm:$0xf]
  %v40 = vld [vmem:[%s2 + $0x8] sm:$0xf]
  %v41 = vld [vmem:[%s2 + $0xc] sm:$0xf]
  %v42 = vld [vmem:[%s4] sm:$0x1]
  %v44 = vlaneseq
  %v45 = vshrl.u32 %v44, 7
  %v46 = vsub.s32 0, %v45
  %v47 = vrot.slane %v42, %v46
  %v57 = vunpack.c.l.b16 %v30
  %v58 = vunpack.c.l.b16 %v31
  %v59 = vunpack.c.l.b16 %v32
  %v60 = vunpack.c.l.b16 %v33
  %v61 = vunpack.c.l.b16 %v34
  %v62 = vunpack.c.l.b16 %v35
  %v63 = vunpack.c.l.b16 %v36
  %v64 = vunpack.c.l.b16 %v37
  %v65 = vpack.c.b16 %v58, %v57
  %v66 = vpack.c.b16 %v60, %v59
  %v67 = vpack.c.b16 %v62, %v61
  %v68 = vpack.c.b16 %v64, %v63
  %v73 = vunpack.c.l.b16 %v38
  %v74 = vunpack.c.l.b16 %v39
  %v75 = vunpack.c.l.b16 %v40
  %v76 = vunpack.c.l.b16 %v41
  %v77 = vpack.c.b16 %v74, %v73
  %v78 = vpack.c.b16 %v76, %v75
  %vm81 = vcmask 261120
  %v83 = vsel %vm81, %v65, 0
  %v86 = vsel %vm81, %v66, 0
  %v89 = vsel %vm81, %v67, 0
  %v92 = vsel %vm81, %v68, 0
  %94 = vmatprep.subr.bf16.mxu0 0
  %95 = vmatpush1.bf16.msra.mxu0 0
  %96 = vmatprep.subr.bf16.mxu0 0
  %97 = vmatpush1.bf16.msra.mxu0 0
  %98 = vmatprep.subr.bf16.mxu0 0
  %99 = vmatpush1.bf16.msra.mxu0 0
  %100 = vmatprep.subr.bf16.mxu0 0
  %101 = vmatpush1.bf16.msra.mxu0 0
  %102 = vmatprep.subr.bf16.mxu0 0
  %103 = vmatpush1.bf16.msra.mxu0 0
  %104 = vmatprep.subr.bf16.mxu0 0
  %105 = vmatpush1.bf16.msra.mxu0 0
  %106 = vmatprep.subr.bf16.mxu0 0
  %107 = vmatpush1.bf16.msra.mxu0 %v78
  %108 = vmatprep.subr.bf16.mxu0 0
  %109 = vmatpush1.bf16.msra.mxu0 %v77
  %110 = vmatprep.subr.bf16.mxu0 0
  %111 = vmatpush2.bf16.msra.mxu0 0
  %112 = vmatprep.subr.bf16.mxu0 0
  %113 = vmatpush2.bf16.msra.mxu0 0
  %114 = vmatprep.subr.bf16.mxu0 0
  %115 = vmatpush2.bf16.msra.mxu0 0
  %116 = vmatprep.subr.bf16.mxu0 0
  %117 = vmatpush2.bf16.msra.mxu0 0
  %118 = vmatprep.subr.bf16.mxu0 0
  %119 = vmatpush2.bf16.msra.mxu0 0
  %120 = vmatprep.subr.bf16.mxu0 0
  %121 = vmatpush2.bf16.msra.mxu0 0
  %122 = vmatprep.subr.bf16.mxu0 0
  %123 = vmatpush2.bf16.msra.mxu0 0
  %124 = vmatprep.subr.bf16.mxu0 0
  %125 = vmatpush2.bf16.msra.mxu0 0
  %126 = vmatprep.mubr.bf16.mxu0 0
  %127 = vmatmul.mubr.bf16.gmra.mxu0 %v83
  %v128 = vpop.f32.mrf.mxu0
  %v129 = vadd.f32 %v47, %v128
  %v130 = vpop.f32.mrf.mxu0
  %v131 = vpop.f32.mrf.mxu0
  %v132 = vadd.f32 %v47, %v131
  %v133 = vpop.f32.mrf.mxu0
  %134 = vmatprep.mubr.bf16.mxu0 0
  %135 = vmatmul.mubr.bf16.gmra.mxu0 %v86
  %v136 = vpop.f32.mrf.mxu0
  %v137 = vadd.f32 %v47, %v136
  %v138 = vpop.f32.mrf.mxu0
  %v139 = vpop.f32.mrf.mxu0
  %v140 = vadd.f32 %v47, %v139
  %v141 = vpop.f32.mrf.mxu0
  %142 = vmatprep.mubr.bf16.mxu0 0
  %143 = vmatmul.mubr.bf16.gmra.mxu0 %v89
  %v144 = vpop.f32.mrf.mxu0
  %v145 = vadd.f32 %v47, %v144
  %v146 = vpop.f32.mrf.mxu0
  %v147 = vpop.f32.mrf.mxu0
  %v148 = vadd.f32 %v47, %v147
  %v149 = vpop.f32.mrf.mxu0
  %150 = vmatprep.mubr.bf16.mxu0 0
  %151 = vmatmul.mubr.bf16.gmra.mxu0 %v92
  %v152 = vpop.f32.mrf.mxu0
  %v153 = vadd.f32 %v47, %v152
  %v154 = vpop.f32.mrf.mxu0
  %v155 = vpop.f32.mrf.mxu0
  %v156 = vadd.f32 %v47, %v155
  %v157 = vpop.f32.mrf.mxu0
  %158 = vdwg.mxu0
  %vm159 = vcmask 785408
  %160 = vst.msk [vmem:[#allocation3] sm:$0xff] %vm159, %v129
  %161 = vst.msk [vmem:[#allocation3 + $0x8] sm:$0xff] %vm159, %v132
  %162 = vst.msk [vmem:[#allocation3 + $0x10] sm:$0xff] %vm159, %v137
  %163 = vst.msk [vmem:[#allocation3 + $0x18] sm:$0xff] %vm159, %v140
  %164 = vst.msk [vmem:[#allocation3 + $0x20] sm:$0xff] %vm159, %v145
  %165 = vst.msk [vmem:[#allocation3 + $0x28] sm:$0xff] %vm159, %v148
  %166 = vst.msk [vmem:[#allocation3 + $0x30] sm:$0xff] %vm159, %v153
  %167 = vst.msk [vmem:[#allocation3 + $0x38] sm:$0xff] %vm159, %v156
  %v168 = vld [vmem:[%s3] sm:$0xf]
  %v169 = vld [vmem:[%s3 + $0x4] sm:$0xf]
  %v170 = vld [vmem:[%s3 + $0x8] sm:$0xf]
  %v171 = vld [vmem:[%s3 + $0xc] sm:$0xf]
  %v172 = vld [vmem:[%s5] sm:$0x1]
  %v173 = vld [vmem:[%s1] sm:$0xff]
  %v174 = vpack.c.bf16 %v173, %v173
  %v179 = vunpack.c.l.b16 %v168
  %v180 = vunpack.c.l.b16 %v169
  %v181 = vunpack.c.l.b16 %v170
  %v182 = vunpack.c.l.b16 %v171
  %v183 = vpack.c.b16 %v180, %v179
  %v184 = vpack.c.b16 %v182, %v181
  %v188 = vsel %vm81, %v174, 0
  %190 = vmatprep.subr.bf16.mxu0 0
  %191 = vmatpush1.bf16.msra.mxu0 0
  %192 = vmatprep.subr.bf16.mxu0 0
  %193 = vmatpush1.bf16.msra.mxu0 0
  %194 = vmatprep.subr.bf16.mxu0 0
  %195 = vmatpush1.bf16.msra.mxu0 0
  %196 = vmatprep.subr.bf16.mxu0 0
  %197 = vmatpush1.bf16.msra.mxu0 0
  %198 = vmatprep.subr.bf16.mxu0 0
  %199 = vmatpush1.bf16.msra.mxu0 0
  %200 = vmatprep.subr.bf16.mxu0 0
  %201 = vmatpush1.bf16.msra.mxu0 0
  %202 = vmatprep.subr.bf16.mxu0 0
  %203 = vmatpush1.bf16.msra.mxu0 %v184
  %204 = vmatprep.subr.bf16.mxu0 0
  %205 = vmatpush1.bf16.msra.mxu0 %v183
  %206 = vmatprep.subr.bf16.mxu0 0
  %207 = vmatpush2.bf16.msra.mxu0 0
  %208 = vmatprep.subr.bf16.mxu0 0
  %209 = vmatpush2.bf16.msra.mxu0 0
  %210 = vmatprep.subr.bf16.mxu0 0
  %211 = vmatpush2.bf16.msra.mxu0 0
  %212 = vmatprep.subr.bf16.mxu0 0
  %213 = vmatpush2.bf16.msra.mxu0 0
  %214 = vmatprep.subr.bf16.mxu0 0
  %215 = vmatpush2.bf16.msra.mxu0 0
  %216 = vmatprep.subr.bf16.mxu0 0
  %217 = vmatpush2.bf16.msra.mxu0 0
  %218 = vmatprep.subr.bf16.mxu0 0
  %219 = vmatpush2.bf16.msra.mxu0 0
  %220 = vmatprep.subr.bf16.mxu0 0
  %221 = vmatpush2.bf16.msra.mxu0 0
  %222 = vmatprep.mubr.bf16.mxu0 0
  %223 = vmatmul.mubr.bf16.gmra.mxu0 %v188
  %v224 = vpop.f32.mrf.mxu0
  %v225 = vadd.f32 0.0, %v224
  %v226 = vpop.f32.mrf.mxu0
  %v227 = vpop.f32.mrf.mxu0
  %v228 = vpop.f32.mrf.mxu0
  %229 = vdwg.mxu0
  %v230 = vld [vmem:[#allocation3] sm:$0xff]
  %v231 = vadd.f32 %v230, %v225
  %v232 = vxor.u32 %v231, 2147483648
  %v233 = vmul.f32 %v232, 1.442695
  %v234 = vpow.pop %v233
  %v235 = vadd.f32 %v234, 1.0
  %v236 = vrcp.pop %v235
  %v237 = vmul.f32 1.0, %v236
  %v239 = vlaneseq
  %v240 = vshrl.u32 %v239, 7
  %v241 = vsub.s32 0, %v240
  %v242 = vrot.slane %v172, %v241
  %243 = vrot.lane.b32.xlu0 %v242, 64
  %v244 = vpop.permute.xlu0 %243
  %v246 = vadd.f32 %v225, %v244
  %248 = vrot.lane.b32.xlu0 %v246, 64
  %v249 = vpop.permute.xlu0 %248
  %v251 = vmul.f32 %v237, %v249
  %253 = vrot.lane.b32.xlu0 %v251, 64
  %v254 = vpop.permute.xlu0 %253
  %v256 = vadd.f32 %v230, %v254
  %v257 = vtanh.pop %v256
  %v258 = vsub.f32 1.0, %v237
  %260 = vrot.lane.b32.xlu0 %v257, 96
  %v261 = vpop.permute.xlu0 %260
  %v263 = vmul.f32 %v258, %v261
  %265 = vrot.lane.b32.xlu0 %v173, 32
  %v266 = vpop.permute.xlu0 %265
  %v268 = vmul.f32 %v237, %v266
  %v269 = vadd.f32 %v263, %v268
  %v270 = vpack.c.bf16 %v269, %v269
  %v272 = vunpack.c.l.b16 %v270
  %v273 = vpack.c.b16 %v272, %v272
  %274 = vrot.lane.b32.xlu0 %v273, 96
  %v275 = vpop.permute.xlu0 %274
  %vm277 = vcmask 257024
  %278 = vst.msk [vmem:[#allocation2] sm:$0xf] %vm277, %v275
  %279 = vrot.lane.b32.xlu0 %v270, 96
  %v280 = vpop.permute.xlu0 %279
  %v282 = vsel %vm81, %v280, 0
  %284 = vmatprep.subr.bf16.mxu0 0
  %285 = vmatpush1.bf16.msra.mxu0 0
  %286 = vmatprep.subr.bf16.mxu0 0
  %287 = vmatpush1.bf16.msra.mxu0 0
  %288 = vmatprep.subr.bf16.mxu0 0
  %289 = vmatpush1.bf16.msra.mxu0 0
  %290 = vmatprep.subr.bf16.mxu0 0
  %291 = vmatpush1.bf16.msra.mxu0 0
  %292 = vmatprep.subr.bf16.mxu0 0
  %293 = vmatpush1.bf16.msra.mxu0 0
  %294 = vmatprep.subr.bf16.mxu0 0
  %295 = vmatpush1.bf16.msra.mxu0 0
  %296 = vmatprep.subr.bf16.mxu0 0
  %297 = vmatpush1.bf16.msra.mxu0 %v184
  %298 = vmatprep.subr.bf16.mxu0 0
  %299 = vmatpush1.bf16.msra.mxu0 %v183
  %300 = vmatprep.subr.bf16.mxu0 0
  %301 = vmatpush2.bf16.msra.mxu0 0
  %302 = vmatprep.subr.bf16.mxu0 0
  %303 = vmatpush2.bf16.msra.mxu0 0
  %304 = vmatprep.subr.bf16.mxu0 0
  %305 = vmatpush2.bf16.msra.mxu0 0
  %306 = vmatprep.subr.bf16.mxu0 0
  %307 = vmatpush2.bf16.msra.mxu0 0
  %308 = vmatprep.subr.bf16.mxu0 0
  %309 = vmatpush2.bf16.msra.mxu0 0
  %310 = vmatprep.subr.bf16.mxu0 0
  %311 = vmatpush2.bf16.msra.mxu0 0
  %312 = vmatprep.subr.bf16.mxu0 0
  %313 = vmatpush2.bf16.msra.mxu0 0
  %314 = vmatprep.subr.bf16.mxu0 0
  %315 = vmatpush2.bf16.msra.mxu0 0
  %316 = vmatprep.mubr.bf16.mxu0 0
  %317 = vmatmul.mubr.bf16.gmra.mxu0 %v282
  %v318 = vpop.f32.mrf.mxu0
  %v319 = vadd.f32 0.0, %v318
  %v320 = vpop.f32.mrf.mxu0
  %v321 = vpop.f32.mrf.mxu0
  %v322 = vpop.f32.mrf.mxu0
  %323 = vdwg.mxu0
  %v324 = vld [vmem:[#allocation3 + $0x8] sm:$0xff]
  %v325 = vadd.f32 %v324, %v319
  %v326 = vxor.u32 %v325, 2147483648
  %v327 = vmul.f32 %v326, 1.442695
  %v328 = vpow.pop %v327
  %v329 = vadd.f32 %v328, 1.0
  %v330 = vrcp.pop %v329
  %v331 = vmul.f32 1.0, %v330
  %v332 = vadd.f32 %v319, %v244
  %334 = vrot.lane.b32.xlu0 %v332, 64
  %v335 = vpop.permute.xlu0 %334
  %v337 = vmul.f32 %v331, %v335
  %339 = vrot.lane.b32.xlu0 %v337, 64
  %v340 = vpop.permute.xlu0 %339
  %v342 = vadd.f32 %v324, %v340
  %v343 = vtanh.pop %v342
  %v344 = vsub.f32 1.0, %v331
  %346 = vrot.lane.b32.xlu0 %v343, 96
  %v347 = vpop.permute.xlu0 %346
  %v349 = vmul.f32 %v344, %v347
  %v350 = vmul.f32 %v331, %v269
  %v351 = vadd.f32 %v349, %v350
  %v352 = vpack.c.bf16 %v351, %v351
  %v354 = vunpack.c.l.b16 %v352
  %v355 = vpack.c.b16 %v354, %v354
  %356 = vrot.lane.b32.xlu0 %v355, 96
  %v357 = vpop.permute.xlu0 %356
  %359 = vst.msk [vmem:[#allocation2 + $0x4] sm:$0xf] %vm277, %v357
  %360 = vrot.lane.b32.xlu0 %v352, 96
  %v361 = vpop.permute.xlu0 %360
  %v363 = vsel %vm81, %v361, 0
  %365 = vmatprep.subr.bf16.mxu0 0
  %366 = vmatpush1.bf16.msra.mxu0 0
  %367 = vmatprep.subr.bf16.mxu0 0
  %368 = vmatpush1.bf16.msra.mxu0 0
  %369 = vmatprep.subr.bf16.mxu0 0
  %370 = vmatpush1.bf16.msra.mxu0 0
  %371 = vmatprep.subr.bf16.mxu0 0
  %372 = vmatpush1.bf16.msra.mxu0 0
  %373 = vmatprep.subr.bf16.mxu0 0
  %374 = vmatpush1.bf16.msra.mxu0 0
  %375 = vmatprep.subr.bf16.mxu0 0
  %376 = vmatpush1.bf16.msra.mxu0 0
  %377 = vmatprep.subr.bf16.mxu0 0
  %378 = vmatpush1.bf16.msra.mxu0 %v184
  %379 = vmatprep.subr.bf16.mxu0 0
  %380 = vmatpush1.bf16.msra.mxu0 %v183
  %381 = vmatprep.subr.bf16.mxu0 0
  %382 = vmatpush2.bf16.msra.mxu0 0
  %383 = vmatprep.subr.bf16.mxu0 0
  %384 = vmatpush2.bf16.msra.mxu0 0
  %385 = vmatprep.subr.bf16.mxu0 0
  %386 = vmatpush2.bf16.msra.mxu0 0
  %387 = vmatprep.subr.bf16.mxu0 0
  %388 = vmatpush2.bf16.msra.mxu0 0
  %389 = vmatprep.subr.bf16.mxu0 0
  %390 = vmatpush2.bf16.msra.mxu0 0
  %391 = vmatprep.subr.bf16.mxu0 0
  %392 = vmatpush2.bf16.msra.mxu0 0
  %393 = vmatprep.subr.bf16.mxu0 0
  %394 = vmatpush2.bf16.msra.mxu0 0
  %395 = vmatprep.subr.bf16.mxu0 0
  %396 = vmatpush2.bf16.msra.mxu0 0
  %397 = vmatprep.mubr.bf16.mxu0 0
  %398 = vmatmul.mubr.bf16.gmra.mxu0 %v363
  %v399 = vpop.f32.mrf.mxu0
  %v400 = vadd.f32 0.0, %v399
  %v401 = vpop.f32.mrf.mxu0
  %v402 = vpop.f32.mrf.mxu0
  %v403 = vpop.f32.mrf.mxu0
  %404 = vdwg.mxu0
  %v405 = vld [vmem:[#allocation3 + $0x10] sm:$0xff]
  %v406 = vadd.f32 %v405, %v400
  %v407 = vxor.u32 %v406, 2147483648
  %v408 = vmul.f32 %v407, 1.442695
  %v409 = vpow.pop %v408
  %v410 = vadd.f32 %v409, 1.0
  %v411 = vrcp.pop %v410
  %v412 = vmul.f32 1.0, %v411
  %v413 = vadd.f32 %v400, %v244
  %415 = vrot.lane.b32.xlu0 %v413, 64
  %v416 = vpop.permute.xlu0 %415
  %v418 = vmul.f32 %v412, %v416
  %420 = vrot.lane.b32.xlu0 %v418, 64
  %v421 = vpop.permute.xlu0 %420
  %v423 = vadd.f32 %v405, %v421
  %v424 = vtanh.pop %v423
  %v425 = vsub.f32 1.0, %v412
  %427 = vrot.lane.b32.xlu0 %v424, 96
  %v428 = vpop.permute.xlu0 %427
  %v430 = vmul.f32 %v425, %v428
  %v431 = vmul.f32 %v412, %v351
  %v432 = vadd.f32 %v430, %v431
  %v433 = vpack.c.bf16 %v432, %v432
  %v435 = vunpack.c.l.b16 %v433
  %v436 = vpack.c.b16 %v435, %v435
  %437 = vrot.lane.b32.xlu0 %v436, 96
  %v438 = vpop.permute.xlu0 %437
  %440 = vst.msk [vmem:[#allocation2 + $0x8] sm:$0xf] %vm277, %v438
  %441 = vrot.lane.b32.xlu0 %v433, 96
  %v442 = vpop.permute.xlu0 %441
  %v444 = vsel %vm81, %v442, 0
  %446 = vmatprep.subr.bf16.mxu0 0
  %447 = vmatpush1.bf16.msra.mxu0 0
  %448 = vmatprep.subr.bf16.mxu0 0
  %449 = vmatpush1.bf16.msra.mxu0 0
  %450 = vmatprep.subr.bf16.mxu0 0
  %451 = vmatpush1.bf16.msra.mxu0 0
  %452 = vmatprep.subr.bf16.mxu0 0
  %453 = vmatpush1.bf16.msra.mxu0 0
  %454 = vmatprep.subr.bf16.mxu0 0
  %455 = vmatpush1.bf16.msra.mxu0 0
  %456 = vmatprep.subr.bf16.mxu0 0
  %457 = vmatpush1.bf16.msra.mxu0 0
  %458 = vmatprep.subr.bf16.mxu0 0
  %459 = vmatpush1.bf16.msra.mxu0 %v184
  %460 = vmatprep.subr.bf16.mxu0 0
  %461 = vmatpush1.bf16.msra.mxu0 %v183
  %462 = vmatprep.subr.bf16.mxu0 0
  %463 = vmatpush2.bf16.msra.mxu0 0
  %464 = vmatprep.subr.bf16.mxu0 0
  %465 = vmatpush2.bf16.msra.mxu0 0
  %466 = vmatprep.subr.bf16.mxu0 0
  %467 = vmatpush2.bf16.msra.mxu0 0
  %468 = vmatprep.subr.bf16.mxu0 0
  %469 = vmatpush2.bf16.msra.mxu0 0
  %470 = vmatprep.subr.bf16.mxu0 0
  %471 = vmatpush2.bf16.msra.mxu0 0
  %472 = vmatprep.subr.bf16.mxu0 0
  %473 = vmatpush2.bf16.msra.mxu0 0
  %474 = vmatprep.subr.bf16.mxu0 0
  %475 = vmatpush2.bf16.msra.mxu0 0
  %476 = vmatprep.subr.bf16.mxu0 0
  %477 = vmatpush2.bf16.msra.mxu0 0
  %478 = vmatprep.mubr.bf16.mxu0 0
  %479 = vmatmul.mubr.bf16.gmra.mxu0 %v444
  %v480 = vpop.f32.mrf.mxu0
  %v481 = vadd.f32 0.0, %v480
  %v482 = vpop.f32.mrf.mxu0
  %v483 = vpop.f32.mrf.mxu0
  %v484 = vpop.f32.mrf.mxu0
  %485 = vdwg.mxu0
  %v486 = vld [vmem:[#allocation3 + $0x18] sm:$0xff]
  %v487 = vadd.f32 %v486, %v481
  %v488 = vxor.u32 %v487, 2147483648
  %v489 = vmul.f32 %v488, 1.442695
  %v490 = vpow.pop %v489
  %v491 = vadd.f32 %v490, 1.0
  %v492 = vrcp.pop %v491
  %v493 = vmul.f32 1.0, %v492
  %v494 = vadd.f32 %v481, %v244
  %496 = vrot.lane.b32.xlu0 %v494, 64
  %v497 = vpop.permute.xlu0 %496
  %v499 = vmul.f32 %v493, %v497
  %501 = vrot.lane.b32.xlu0 %v499, 64
  %v502 = vpop.permute.xlu0 %501
  %v504 = vadd.f32 %v486, %v502
  %v505 = vtanh.pop %v504
  %v506 = vsub.f32 1.0, %v493
  %508 = vrot.lane.b32.xlu0 %v505, 96
  %v509 = vpop.permute.xlu0 %508
  %v511 = vmul.f32 %v506, %v509
  %v512 = vmul.f32 %v493, %v432
  %v513 = vadd.f32 %v511, %v512
  %v514 = vpack.c.bf16 %v513, %v513
  %v516 = vunpack.c.l.b16 %v514
  %v517 = vpack.c.b16 %v516, %v516
  %518 = vrot.lane.b32.xlu0 %v517, 96
  %v519 = vpop.permute.xlu0 %518
  %521 = vst.msk [vmem:[#allocation2 + $0xc] sm:$0xf] %vm277, %v519
  %522 = vrot.lane.b32.xlu0 %v514, 96
  %v523 = vpop.permute.xlu0 %522
  %v525 = vsel %vm81, %v523, 0
  %527 = vmatprep.subr.bf16.mxu0 0
  %528 = vmatpush1.bf16.msra.mxu0 0
  %529 = vmatprep.subr.bf16.mxu0 0
  %530 = vmatpush1.bf16.msra.mxu0 0
  %531 = vmatprep.subr.bf16.mxu0 0
  %532 = vmatpush1.bf16.msra.mxu0 0
  %533 = vmatprep.subr.bf16.mxu0 0
  %534 = vmatpush1.bf16.msra.mxu0 0
  %535 = vmatprep.subr.bf16.mxu0 0
  %536 = vmatpush1.bf16.msra.mxu0 0
  %537 = vmatprep.subr.bf16.mxu0 0
  %538 = vmatpush1.bf16.msra.mxu0 0
  %539 = vmatprep.subr.bf16.mxu0 0
  %540 = vmatpush1.bf16.msra.mxu0 %v184
  %541 = vmatprep.subr.bf16.mxu0 0
  %542 = vmatpush1.bf16.msra.mxu0 %v183
  %543 = vmatprep.subr.bf16.mxu0 0
  %544 = vmatpush2.bf16.msra.mxu0 0
  %545 = vmatprep.subr.bf16.mxu0 0
  %546 = vmatpush2.bf16.msra.mxu0 0
  %547 = vmatprep.subr.bf16.mxu0 0
  %548 = vmatpush2.bf16.msra.mxu0 0
  %549 = vmatprep.subr.bf16.mxu0 0
  %550 = vmatpush2.bf16.msra.mxu0 0
  %551 = vmatprep.subr.bf16.mxu0 0
  %552 = vmatpush2.bf16.msra.mxu0 0
  %553 = vmatprep.subr.bf16.mxu0 0
  %554 = vmatpush2.bf16.msra.mxu0 0
  %555 = vmatprep.subr.bf16.mxu0 0
  %556 = vmatpush2.bf16.msra.mxu0 0
  %557 = vmatprep.subr.bf16.mxu0 0
  %558 = vmatpush2.bf16.msra.mxu0 0
  %559 = vmatprep.mubr.bf16.mxu0 0
  %560 = vmatmul.mubr.bf16.gmra.mxu0 %v525
  %v561 = vpop.f32.mrf.mxu0
  %v562 = vadd.f32 0.0, %v561
  %v563 = vpop.f32.mrf.mxu0
  %v564 = vpop.f32.mrf.mxu0
  %v565 = vpop.f32.mrf.mxu0
  %566 = vdwg.mxu0
  %v567 = vld [vmem:[#allocation3 + $0x20] sm:$0xff]
  %v568 = vadd.f32 %v567, %v562
  %v569 = vxor.u32 %v568, 2147483648
  %v570 = vmul.f32 %v569, 1.442695
  %v571 = vpow.pop %v570
  %v572 = vadd.f32 %v571, 1.0
  %v573 = vrcp.pop %v572
  %v574 = vmul.f32 1.0, %v573
  %v575 = vadd.f32 %v562, %v244
  %577 = vrot.lane.b32.xlu0 %v575, 64
  %v578 = vpop.permute.xlu0 %577
  %v580 = vmul.f32 %v574, %v578
  %582 = vrot.lane.b32.xlu0 %v580, 64
  %v583 = vpop.permute.xlu0 %582
  %v585 = vadd.f32 %v567, %v583
  %v586 = vtanh.pop %v585
  %v587 = vsub.f32 1.0, %v574
  %589 = vrot.lane.b32.xlu0 %v586, 96
  %v590 = vpop.permute.xlu0 %589
  %v592 = vmul.f32 %v587, %v590
  %v593 = vmul.f32 %v574, %v513
  %v594 = vadd.f32 %v592, %v593
  %v595 = vpack.c.bf16 %v594, %v594
  %v597 = vunpack.c.l.b16 %v595
  %v598 = vpack.c.b16 %v597, %v597
  %599 = vrot.lane.b32.xlu0 %v598, 96
  %v600 = vpop.permute.xlu0 %599
  %602 = vst.msk [vmem:[#allocation2 + $0x10] sm:$0xf] %vm277, %v600
  %603 = vrot.lane.b32.xlu0 %v595, 96
  %v604 = vpop.permute.xlu0 %603
  %v606 = vsel %vm81, %v604, 0
  %608 = vmatprep.subr.bf16.mxu0 0
  %609 = vmatpush1.bf16.msra.mxu0 0
  %610 = vmatprep.subr.bf16.mxu0 0
  %611 = vmatpush1.bf16.msra.mxu0 0
  %612 = vmatprep.subr.bf16.mxu0 0
  %613 = vmatpush1.bf16.msra.mxu0 0
  %614 = vmatprep.subr.bf16.mxu0 0
  %615 = vmatpush1.bf16.msra.mxu0 0
  %616 = vmatprep.subr.bf16.mxu0 0
  %617 = vmatpush1.bf16.msra.mxu0 0
  %618 = vmatprep.subr.bf16.mxu0 0
  %619 = vmatpush1.bf16.msra.mxu0 0
  %620 = vmatprep.subr.bf16.mxu0 0
  %621 = vmatpush1.bf16.msra.mxu0 %v184
  %622 = vmatprep.subr.bf16.mxu0 0
  %623 = vmatpush1.bf16.msra.mxu0 %v183
  %624 = vmatprep.subr.bf16.mxu0 0
  %625 = vmatpush2.bf16.msra.mxu0 0
  %626 = vmatprep.subr.bf16.mxu0 0
  %627 = vmatpush2.bf16.msra.mxu0 0
  %628 = vmatprep.subr.bf16.mxu0 0
  %629 = vmatpush2.bf16.msra.mxu0 0
  %630 = vmatprep.subr.bf16.mxu0 0
  %631 = vmatpush2.bf16.msra.mxu0 0
  %632 = vmatprep.subr.bf16.mxu0 0
  %633 = vmatpush2.bf16.msra.mxu0 0
  %634 = vmatprep.subr.bf16.mxu0 0
  %635 = vmatpush2.bf16.msra.mxu0 0
  %636 = vmatprep.subr.bf16.mxu0 0
  %637 = vmatpush2.bf16.msra.mxu0 0
  %638 = vmatprep.subr.bf16.mxu0 0
  %639 = vmatpush2.bf16.msra.mxu0 0
  %640 = vmatprep.mubr.bf16.mxu0 0
  %641 = vmatmul.mubr.bf16.gmra.mxu0 %v606
  %v642 = vpop.f32.mrf.mxu0
  %v643 = vadd.f32 0.0, %v642
  %v644 = vpop.f32.mrf.mxu0
  %v645 = vpop.f32.mrf.mxu0
  %v646 = vpop.f32.mrf.mxu0
  %647 = vdwg.mxu0
  %v648 = vld [vmem:[#allocation3 + $0x28] sm:$0xff]
  %v649 = vadd.f32 %v648, %v643
  %v650 = vxor.u32 %v649, 2147483648
  %v651 = vmul.f32 %v650, 1.442695
  %v652 = vpow.pop %v651
  %v653 = vadd.f32 %v652, 1.0
  %v654 = vrcp.pop %v653
  %v655 = vmul.f32 1.0, %v654
  %v656 = vadd.f32 %v643, %v244
  %658 = vrot.lane.b32.xlu0 %v656, 64
  %v659 = vpop.permute.xlu0 %658
  %v661 = vmul.f32 %v655, %v659
  %663 = vrot.lane.b32.xlu0 %v661, 64
  %v664 = vpop.permute.xlu0 %663
  %v666 = vadd.f32 %v648, %v664
  %v667 = vtanh.pop %v666
  %v668 = vsub.f32 1.0, %v655
  %670 = vrot.lane.b32.xlu0 %v667, 96
  %v671 = vpop.permute.xlu0 %670
  %v673 = vmul.f32 %v668, %v671
  %v674 = vmul.f32 %v655, %v594
  %v675 = vadd.f32 %v673, %v674
  %v676 = vpack.c.bf16 %v675, %v675
  %v678 = vunpack.c.l.b16 %v676
  %v679 = vpack.c.b16 %v678, %v678
  %680 = vrot.lane.b32.xlu0 %v679, 96
  %v681 = vpop.permute.xlu0 %680
  %683 = vst.msk [vmem:[#allocation2 + $0x14] sm:$0xf] %vm277, %v681
  %684 = vrot.lane.b32.xlu0 %v676, 96
  %v685 = vpop.permute.xlu0 %684
  %v687 = vsel %vm81, %v685, 0
  %689 = vmatprep.subr.bf16.mxu0 0
  %690 = vmatpush1.bf16.msra.mxu0 0
  %691 = vmatprep.subr.bf16.mxu0 0
  %692 = vmatpush1.bf16.msra.mxu0 0
  %693 = vmatprep.subr.bf16.mxu0 0
  %694 = vmatpush1.bf16.msra.mxu0 0
  %695 = vmatprep.subr.bf16.mxu0 0
  %696 = vmatpush1.bf16.msra.mxu0 0
  %697 = vmatprep.subr.bf16.mxu0 0
  %698 = vmatpush1.bf16.msra.mxu0 0
  %699 = vmatprep.subr.bf16.mxu0 0
  %700 = vmatpush1.bf16.msra.mxu0 0
  %701 = vmatprep.subr.bf16.mxu0 0
  %702 = vmatpush1.bf16.msra.mxu0 %v184
  %703 = vmatprep.subr.bf16.mxu0 0
  %704 = vmatpush1.bf16.msra.mxu0 %v183
  %705 = vmatprep.subr.bf16.mxu0 0
  %706 = vmatpush2.bf16.msra.mxu0 0
  %707 = vmatprep.subr.bf16.mxu0 0
  %708 = vmatpush2.bf16.msra.mxu0 0
  %709 = vmatprep.subr.bf16.mxu0 0
  %710 = vmatpush2.bf16.msra.mxu0 0
  %711 = vmatprep.subr.bf16.mxu0 0
  %712 = vmatpush2.bf16.msra.mxu0 0
  %713 = vmatprep.subr.bf16.mxu0 0
  %714 = vmatpush2.bf16.msra.mxu0 0
  %715 = vmatprep.subr.bf16.mxu0 0
  %716 = vmatpush2.bf16.msra.mxu0 0
  %717 = vmatprep.subr.bf16.mxu0 0
  %718 = vmatpush2.bf16.msra.mxu0 0
  %719 = vmatprep.subr.bf16.mxu0 0
  %720 = vmatpush2.bf16.msra.mxu0 0
  %721 = vmatprep.mubr.bf16.mxu0 0
  %722 = vmatmul.mubr.bf16.gmra.mxu0 %v687
  %v723 = vpop.f32.mrf.mxu0
  %v724 = vadd.f32 0.0, %v723
  %v725 = vpop.f32.mrf.mxu0
  %v726 = vpop.f32.mrf.mxu0
  %v727 = vpop.f32.mrf.mxu0
  %728 = vdwg.mxu0
  %v729 = vld [vmem:[#allocation3 + $0x30] sm:$0xff]
  %v730 = vadd.f32 %v729, %v724
  %v731 = vxor.u32 %v730, 2147483648
  %v732 = vmul.f32 %v731, 1.442695
  %v733 = vpow.pop %v732
  %v734 = vadd.f32 %v733, 1.0
  %v735 = vrcp.pop %v734
  %v736 = vmul.f32 1.0, %v735
  %v737 = vadd.f32 %v724, %v244
  %739 = vrot.lane.b32.xlu0 %v737, 64
  %v740 = vpop.permute.xlu0 %739
  %v742 = vmul.f32 %v736, %v740
  %744 = vrot.lane.b32.xlu0 %v742, 64
  %v745 = vpop.permute.xlu0 %744
  %v747 = vadd.f32 %v729, %v745
  %v748 = vtanh.pop %v747
  %v749 = vsub.f32 1.0, %v736
  %751 = vrot.lane.b32.xlu0 %v748, 96
  %v752 = vpop.permute.xlu0 %751
  %v754 = vmul.f32 %v749, %v752
  %v755 = vmul.f32 %v736, %v675
  %v756 = vadd.f32 %v754, %v755
  %v757 = vpack.c.bf16 %v756, %v756
  %v759 = vunpack.c.l.b16 %v757
  %v760 = vpack.c.b16 %v759, %v759
  %761 = vrot.lane.b32.xlu0 %v760, 96
  %v762 = vpop.permute.xlu0 %761
  %764 = vst.msk [vmem:[#allocation2 + $0x18] sm:$0xf] %vm277, %v762
  %765 = vrot.lane.b32.xlu0 %v757, 96
  %v766 = vpop.permute.xlu0 %765
  %v768 = vsel %vm81, %v766, 0
  %770 = vmatprep.subr.bf16.mxu0 0
  %771 = vmatpush1.bf16.msra.mxu0 0
  %772 = vmatprep.subr.bf16.mxu0 0
  %773 = vmatpush1.bf16.msra.mxu0 0
  %774 = vmatprep.subr.bf16.mxu0 0
  %775 = vmatpush1.bf16.msra.mxu0 0
  %776 = vmatprep.subr.bf16.mxu0 0
  %777 = vmatpush1.bf16.msra.mxu0 0
  %778 = vmatprep.subr.bf16.mxu0 0
  %779 = vmatpush1.bf16.msra.mxu0 0
  %780 = vmatprep.subr.bf16.mxu0 0
  %781 = vmatpush1.bf16.msra.mxu0 0
  %782 = vmatprep.subr.bf16.mxu0 0
  %783 = vmatpush1.bf16.msra.mxu0 %v184
  %784 = vmatprep.subr.bf16.mxu0 0
  %785 = vmatpush1.bf16.msra.mxu0 %v183
  %786 = vmatprep.subr.bf16.mxu0 0
  %787 = vmatpush2.bf16.msra.mxu0 0
  %788 = vmatprep.subr.bf16.mxu0 0
  %789 = vmatpush2.bf16.msra.mxu0 0
  %790 = vmatprep.subr.bf16.mxu0 0
  %791 = vmatpush2.bf16.msra.mxu0 0
  %792 = vmatprep.subr.bf16.mxu0 0
  %793 = vmatpush2.bf16.msra.mxu0 0
  %794 = vmatprep.subr.bf16.mxu0 0
  %795 = vmatpush2.bf16.msra.mxu0 0
  %796 = vmatprep.subr.bf16.mxu0 0
  %797 = vmatpush2.bf16.msra.mxu0 0
  %798 = vmatprep.subr.bf16.mxu0 0
  %799 = vmatpush2.bf16.msra.mxu0 0
  %800 = vmatprep.subr.bf16.mxu0 0
  %801 = vmatpush2.bf16.msra.mxu0 0
  %802 = vmatprep.mubr.bf16.mxu0 0
  %803 = vmatmul.mubr.bf16.gmra.mxu0 %v768
  %v804 = vpop.f32.mrf.mxu0
  %v805 = vadd.f32 0.0, %v804
  %v806 = vpop.f32.mrf.mxu0
  %v807 = vpop.f32.mrf.mxu0
  %v808 = vpop.f32.mrf.mxu0
  %809 = vdwg.mxu0
  %v810 = vld [vmem:[#allocation3 + $0x38] sm:$0xff]
  %v811 = vadd.f32 %v810, %v805
  %v812 = vxor.u32 %v811, 2147483648
  %v813 = vmul.f32 %v812, 1.442695
  %v814 = vpow.pop %v813
  %v815 = vadd.f32 %v814, 1.0
  %v816 = vrcp.pop %v815
  %v817 = vmul.f32 1.0, %v816
  %v818 = vadd.f32 %v805, %v244
  %820 = vrot.lane.b32.xlu0 %v818, 64
  %v821 = vpop.permute.xlu0 %820
  %v823 = vmul.f32 %v817, %v821
  %825 = vrot.lane.b32.xlu0 %v823, 64
  %v826 = vpop.permute.xlu0 %825
  %v828 = vadd.f32 %v810, %v826
  %v829 = vtanh.pop %v828
  %v830 = vsub.f32 1.0, %v817
  %832 = vrot.lane.b32.xlu0 %v829, 96
  %v833 = vpop.permute.xlu0 %832
  %v835 = vmul.f32 %v830, %v833
  %v836 = vmul.f32 %v817, %v756
  %v837 = vadd.f32 %v835, %v836
  %v838 = vpack.c.bf16 %v837, %v837
  %v840 = vunpack.c.l.b16 %v838
  %v841 = vpack.c.b16 %v840, %v840
  %842 = vrot.lane.b32.xlu0 %v841, 96
  %v843 = vpop.permute.xlu0 %842
  %845 = vst.msk [vmem:[#allocation2 + $0x1c] sm:$0xf] %vm277, %v843
  %v846 = vld [vmem:[#allocation2] sm:$0xf]
  %v847 = vld [vmem:[#allocation2 + $0x4] sm:$0xf]
  %v848 = vld [vmem:[#allocation2 + $0x8] sm:$0xf]
  %v849 = vld [vmem:[#allocation2 + $0xc] sm:$0xf]
  %v850 = vld [vmem:[#allocation2 + $0x10] sm:$0xf]
  %v851 = vld [vmem:[#allocation2 + $0x14] sm:$0xf]
  %v852 = vld [vmem:[#allocation2 + $0x18] sm:$0xf]
  %v853 = vld [vmem:[#allocation2 + $0x1c] sm:$0xf]
  %s854 = scalar_lea.vmem %s2, 16
  %v855 = vld [vmem:[%s854] sm:$0xf]
  %v856 = vld [vmem:[%s854 + $0x4] sm:$0xf]
  %v857 = vld [vmem:[%s854 + $0x8] sm:$0xf]
  %v858 = vld [vmem:[%s854 + $0xc] sm:$0xf]
  %s859 = scalar_lea.vmem %s4, 1
  %v860 = vld [vmem:[%s859] sm:$0x1]
  %v862 = vlaneseq
  %v863 = vshrl.u32 %v862, 7
  %v864 = vsub.s32 0, %v863
  %v865 = vrot.slane %v860, %v864
  %v875 = vunpack.c.l.b16 %v846
  %v876 = vunpack.c.l.b16 %v847
  %v877 = vunpack.c.l.b16 %v848
  %v878 = vunpack.c.l.b16 %v849
  %v879 = vunpack.c.l.b16 %v850
  %v880 = vunpack.c.l.b16 %v851
  %v881 = vunpack.c.l.b16 %v852
  %v882 = vunpack.c.l.b16 %v853
  %v883 = vpack.c.b16 %v876, %v875
  %v884 = vpack.c.b16 %v878, %v877
  %v885 = vpack.c.b16 %v880, %v879
  %v886 = vpack.c.b16 %v882, %v881
  %v891 = vunpack.c.l.b16 %v855
  %v892 = vunpack.c.l.b16 %v856
  %v893 = vunpack.c.l.b16 %v857
  %v894 = vunpack.c.l.b16 %v858
  %v895 = vpack.c.b16 %v892, %v891
  %v896 = vpack.c.b16 %v894, %v893
  %v900 = vsel %vm81, %v883, 0
  %v903 = vsel %vm81, %v884, 0
  %v906 = vsel %vm81, %v885, 0
  %v909 = vsel %vm81, %v886, 0
  %911 = vmatprep.subr.bf16.mxu0 0
  %912 = vmatpush1.bf16.msra.mxu0 0
  %913 = vmatprep.subr.bf16.mxu0 0
  %914 = vmatpush1.bf16.msra.mxu0 0
  %915 = vmatprep.subr.bf16.mxu0 0
  %916 = vmatpush1.bf16.msra.mxu0 0
  %917 = vmatprep.subr.bf16.mxu0 0
  %918 = vmatpush1.bf16.msra.mxu0 0
  %919 = vmatprep.subr.bf16.mxu0 0
  %920 = vmatpush1.bf16.msra.mxu0 0
  %921 = vmatprep.subr.bf16.mxu0 0
  %922 = vmatpush1.bf16.msra.mxu0 0
  %923 = vmatprep.subr.bf16.mxu0 0
  %924 = vmatpush1.bf16.msra.mxu0 %v896
  %925 = vmatprep.subr.bf16.mxu0 0
  %926 = vmatpush1.bf16.msra.mxu0 %v895
  %927 = vmatprep.subr.bf16.mxu0 0
  %928 = vmatpush2.bf16.msra.mxu0 0
  %929 = vmatprep.subr.bf16.mxu0 0
  %930 = vmatpush2.bf16.msra.mxu0 0
  %931 = vmatprep.subr.bf16.mxu0 0
  %932 = vmatpush2.bf16.msra.mxu0 0
  %933 = vmatprep.subr.bf16.mxu0 0
  %934 = vmatpush2.bf16.msra.mxu0 0
  %935 = vmatprep.subr.bf16.mxu0 0
  %936 = vmatpush2.bf16.msra.mxu0 0
  %937 = vmatprep.subr.bf16.mxu0 0
  %938 = vmatpush2.bf16.msra.mxu0 0
  %939 = vmatprep.subr.bf16.mxu0 0
  %940 = vmatpush2.bf16.msra.mxu0 0
  %941 = vmatprep.subr.bf16.mxu0 0
  %942 = vmatpush2.bf16.msra.mxu0 0
  %943 = vmatprep.mubr.bf16.mxu0 0
  %944 = vmatmul.mubr.bf16.gmra.mxu0 %v900
  %v945 = vpop.f32.mrf.mxu0
  %v946 = vadd.f32 %v865, %v945
  %v947 = vpop.f32.mrf.mxu0
  %v948 = vpop.f32.mrf.mxu0
  %v949 = vadd.f32 %v865, %v948
  %v950 = vpop.f32.mrf.mxu0
  %951 = vmatprep.mubr.bf16.mxu0 0
  %952 = vmatmul.mubr.bf16.gmra.mxu0 %v903
  %v953 = vpop.f32.mrf.mxu0
  %v954 = vadd.f32 %v865, %v953
  %v955 = vpop.f32.mrf.mxu0
  %v956 = vpop.f32.mrf.mxu0
  %v957 = vadd.f32 %v865, %v956
  %v958 = vpop.f32.mrf.mxu0
  %959 = vmatprep.mubr.bf16.mxu0 0
  %960 = vmatmul.mubr.bf16.gmra.mxu0 %v906
  %v961 = vpop.f32.mrf.mxu0
  %v962 = vadd.f32 %v865, %v961
  %v963 = vpop.f32.mrf.mxu0
  %v964 = vpop.f32.mrf.mxu0
  %v965 = vadd.f32 %v865, %v964
  %v966 = vpop.f32.mrf.mxu0
  %967 = vmatprep.mubr.bf16.mxu0 0
  %968 = vmatmul.mubr.bf16.gmra.mxu0 %v909
  %v969 = vpop.f32.mrf.mxu0
  %v970 = vadd.f32 %v865, %v969
  %v971 = vpop.f32.mrf.mxu0
  %v972 = vpop.f32.mrf.mxu0
  %v973 = vadd.f32 %v865, %v972
  %v974 = vpop.f32.mrf.mxu0
  %975 = vdwg.mxu0
  %976 = vst.msk [vmem:[#allocation3] sm:$0xff] %vm159, %v946
  %977 = vst.msk [vmem:[#allocation3 + $0x8] sm:$0xff] %vm159, %v949
  %978 = vst.msk [vmem:[#allocation3 + $0x10] sm:$0xff] %vm159, %v954
  %979 = vst.msk [vmem:[#allocation3 + $0x18] sm:$0xff] %vm159, %v957
  %980 = vst.msk [vmem:[#allocation3 + $0x20] sm:$0xff] %vm159, %v962
  %981 = vst.msk [vmem:[#allocation3 + $0x28] sm:$0xff] %vm159, %v965
  %982 = vst.msk [vmem:[#allocation3 + $0x30] sm:$0xff] %vm159, %v970
  %983 = vst.msk [vmem:[#allocation3 + $0x38] sm:$0xff] %vm159, %v973
  %s984 = scalar_lea.vmem %s3, 16
  %v985 = vld [vmem:[%s984] sm:$0xf]
  %v986 = vld [vmem:[%s984 + $0x4] sm:$0xf]
  %v987 = vld [vmem:[%s984 + $0x8] sm:$0xf]
  %v988 = vld [vmem:[%s984 + $0xc] sm:$0xf]
  %s989 = scalar_lea.vmem %s5, 1
  %v990 = vld [vmem:[%s989] sm:$0x1]
  %s991 = scalar_lea.vmem %s1, 8
  %v992 = vld [vmem:[%s991] sm:$0xff]
  %v993 = vpack.c.bf16 %v992, %v992
  %v998 = vunpack.c.l.b16 %v985
  %v999 = vunpack.c.l.b16 %v986
  %v1000 = vunpack.c.l.b16 %v987
  %v1001 = vunpack.c.l.b16 %v988
  %v1002 = vpack.c.b16 %v999, %v998
  %v1003 = vpack.c.b16 %v1001, %v1000
  %v1007 = vsel %vm81, %v993, 0
  %1009 = vmatprep.subr.bf16.mxu0 0
  %1010 = vmatpush1.bf16.msra.mxu0 0
  %1011 = vmatprep.subr.bf16.mxu0 0
  %1012 = vmatpush1.bf16.msra.mxu0 0
  %1013 = vmatprep.subr.bf16.mxu0 0
  %1014 = vmatpush1.bf16.msra.mxu0 0
  %1015 = vmatprep.subr.bf16.mxu0 0
  %1016 = vmatpush1.bf16.msra.mxu0 0
  %1017 = vmatprep.subr.bf16.mxu0 0
  %1018 = vmatpush1.bf16.msra.mxu0 0
  %1019 = vmatprep.subr.bf16.mxu0 0
  %1020 = vmatpush1.bf16.msra.mxu0 0
  %1021 = vmatprep.subr.bf16.mxu0 0
  %1022 = vmatpush1.bf16.msra.mxu0 %v1003
  %1023 = vmatprep.subr.bf16.mxu0 0
  %1024 = vmatpush1.bf16.msra.mxu0 %v1002
  %1025 = vmatprep.subr.bf16.mxu0 0
  %1026 = vmatpush2.bf16.msra.mxu0 0
  %1027 = vmatprep.subr.bf16.mxu0 0
  %1028 = vmatpush2.bf16.msra.mxu0 0
  %1029 = vmatprep.subr.bf16.mxu0 0
  %1030 = vmatpush2.bf16.msra.mxu0 0
  %1031 = vmatprep.subr.bf16.mxu0 0
  %1032 = vmatpush2.bf16.msra.mxu0 0
  %1033 = vmatprep.subr.bf16.mxu0 0
  %1034 = vmatpush2.bf16.msra.mxu0 0
  %1035 = vmatprep.subr.bf16.mxu0 0
  %1036 = vmatpush2.bf16.msra.mxu0 0
  %1037 = vmatprep.subr.bf16.mxu0 0
  %1038 = vmatpush2.bf16.msra.mxu0 0
  %1039 = vmatprep.subr.bf16.mxu0 0
  %1040 = vmatpush2.bf16.msra.mxu0 0
  %1041 = vmatprep.mubr.bf16.mxu0 0
  %1042 = vmatmul.mubr.bf16.gmra.mxu0 %v1007
  %v1043 = vpop.f32.mrf.mxu0
  %v1044 = vadd.f32 0.0, %v1043
  %v1045 = vpop.f32.mrf.mxu0
  %v1046 = vpop.f32.mrf.mxu0
  %v1047 = vpop.f32.mrf.mxu0
  %1048 = vdwg.mxu0
  %v1049 = vld [vmem:[#allocation3] sm:$0xff]
  %v1050 = vadd.f32 %v1049, %v1044
  %v1051 = vxor.u32 %v1050, 2147483648
  %v1052 = vmul.f32 %v1051, 1.442695
  %v1053 = vpow.pop %v1052
  %v1054 = vadd.f32 %v1053, 1.0
  %v1055 = vrcp.pop %v1054
  %v1056 = vmul.f32 1.0, %v1055
  %v1058 = vlaneseq
  %v1059 = vshrl.u32 %v1058, 7
  %v1060 = vsub.s32 0, %v1059
  %v1061 = vrot.slane %v990, %v1060
  %1062 = vrot.lane.b32.xlu0 %v1061, 64
  %v1063 = vpop.permute.xlu0 %1062
  %v1065 = vadd.f32 %v1044, %v1063
  %1067 = vrot.lane.b32.xlu0 %v1065, 64
  %v1068 = vpop.permute.xlu0 %1067
  %v1070 = vmul.f32 %v1056, %v1068
  %1072 = vrot.lane.b32.xlu0 %v1070, 64
  %v1073 = vpop.permute.xlu0 %1072
  %v1075 = vadd.f32 %v1049, %v1073
  %v1076 = vtanh.pop %v1075
  %v1077 = vsub.f32 1.0, %v1056
  %1079 = vrot.lane.b32.xlu0 %v1076, 96
  %v1080 = vpop.permute.xlu0 %1079
  %v1082 = vmul.f32 %v1077, %v1080
  %1084 = vrot.lane.b32.xlu0 %v992, 32
  %v1085 = vpop.permute.xlu0 %1084
  %v1087 = vmul.f32 %v1056, %v1085
  %v1088 = vadd.f32 %v1082, %v1087
  %v1089 = vpack.c.bf16 %v1088, %v1088
  %v1091 = vunpack.c.l.b16 %v1089
  %v1092 = vpack.c.b16 %v1091, %v1091
  %1093 = vrot.lane.b32.xlu0 %v1092, 96
  %v1094 = vpop.permute.xlu0 %1093
  %1096 = vst.msk [vmem:[#allocation2] sm:$0xf] %vm277, %v1094
  %1097 = vrot.lane.b32.xlu0 %v1089, 96
  %v1098 = vpop.permute.xlu0 %1097
  %v1100 = vsel %vm81, %v1098, 0
  %1102 = vmatprep.subr.bf16.mxu0 0
  %1103 = vmatpush1.bf16.msra.mxu0 0
  %1104 = vmatprep.subr.bf16.mxu0 0
  %1105 = vmatpush1.bf16.msra.mxu0 0
  %1106 = vmatprep.subr.bf16.mxu0 0
  %1107 = vmatpush1.bf16.msra.mxu0 0
  %1108 = vmatprep.subr.bf16.mxu0 0
  %1109 = vmatpush1.bf16.msra.mxu0 0
  %1110 = vmatprep.subr.bf16.mxu0 0
  %1111 = vmatpush1.bf16.msra.mxu0 0
  %1112 = vmatprep.subr.bf16.mxu0 0
  %1113 = vmatpush1.bf16.msra.mxu0 0
  %1114 = vmatprep.subr.bf16.mxu0 0
  %1115 = vmatpush1.bf16.msra.mxu0 %v1003
  %1116 = vmatprep.subr.bf16.mxu0 0
  %1117 = vmatpush1.bf16.msra.mxu0 %v1002
  %1118 = vmatprep.subr.bf16.mxu0 0
  %1119 = vmatpush2.bf16.msra.mxu0 0
  %1120 = vmatprep.subr.bf16.mxu0 0
  %1121 = vmatpush2.bf16.msra.mxu0 0
  %1122 = vmatprep.subr.bf16.mxu0 0
  %1123 = vmatpush2.bf16.msra.mxu0 0
  %1124 = vmatprep.subr.bf16.mxu0 0
  %1125 = vmatpush2.bf16.msra.mxu0 0
  %1126 = vmatprep.subr.bf16.mxu0 0
  %1127 = vmatpush2.bf16.msra.mxu0 0
  %1128 = vmatprep.subr.bf16.mxu0 0
  %1129 = vmatpush2.bf16.msra.mxu0 0
  %1130 = vmatprep.subr.bf16.mxu0 0
  %1131 = vmatpush2.bf16.msra.mxu0 0
  %1132 = vmatprep.subr.bf16.mxu0 0
  %1133 = vmatpush2.bf16.msra.mxu0 0
  %1134 = vmatprep.mubr.bf16.mxu0 0
  %1135 = vmatmul.mubr.bf16.gmra.mxu0 %v1100
  %v1136 = vpop.f32.mrf.mxu0
  %v1137 = vadd.f32 0.0, %v1136
  %v1138 = vpop.f32.mrf.mxu0
  %v1139 = vpop.f32.mrf.mxu0
  %v1140 = vpop.f32.mrf.mxu0
  %1141 = vdwg.mxu0
  %v1142 = vld [vmem:[#allocation3 + $0x8] sm:$0xff]
  %v1143 = vadd.f32 %v1142, %v1137
  %v1144 = vxor.u32 %v1143, 2147483648
  %v1145 = vmul.f32 %v1144, 1.442695
  %v1146 = vpow.pop %v1145
  %v1147 = vadd.f32 %v1146, 1.0
  %v1148 = vrcp.pop %v1147
  %v1149 = vmul.f32 1.0, %v1148
  %v1150 = vadd.f32 %v1137, %v1063
  %1152 = vrot.lane.b32.xlu0 %v1150, 64
  %v1153 = vpop.permute.xlu0 %1152
  %v1155 = vmul.f32 %v1149, %v1153
  %1157 = vrot.lane.b32.xlu0 %v1155, 64
  %v1158 = vpop.permute.xlu0 %1157
  %v1160 = vadd.f32 %v1142, %v1158
  %v1161 = vtanh.pop %v1160
  %v1162 = vsub.f32 1.0, %v1149
  %1164 = vrot.lane.b32.xlu0 %v1161, 96
  %v1165 = vpop.permute.xlu0 %1164
  %v1167 = vmul.f32 %v1162, %v1165
  %v1168 = vmul.f32 %v1149, %v1088
  %v1169 = vadd.f32 %v1167, %v1168
  %v1170 = vpack.c.bf16 %v1169, %v1169
  %v1172 = vunpack.c.l.b16 %v1170
  %v1173 = vpack.c.b16 %v1172, %v1172
  %1174 = vrot.lane.b32.xlu0 %v1173, 96
  %v1175 = vpop.permute.xlu0 %1174
  %1177 = vst.msk [vmem:[#allocation2 + $0x4] sm:$0xf] %vm277, %v1175
  %1178 = vrot.lane.b32.xlu0 %v1170, 96
  %v1179 = vpop.permute.xlu0 %1178
  %v1181 = vsel %vm81, %v1179, 0
  %1183 = vmatprep.subr.bf16.mxu0 0
  %1184 = vmatpush1.bf16.msra.mxu0 0
  %1185 = vmatprep.subr.bf16.mxu0 0
  %1186 = vmatpush1.bf16.msra.mxu0 0
  %1187 = vmatprep.subr.bf16.mxu0 0
  %1188 = vmatpush1.bf16.msra.mxu0 0
  %1189 = vmatprep.subr.bf16.mxu0 0
  %1190 = vmatpush1.bf16.msra.mxu0 0
  %1191 = vmatprep.subr.bf16.mxu0 0
  %1192 = vmatpush1.bf16.msra.mxu0 0
  %1193 = vmatprep.subr.bf16.mxu0 0
  %1194 = vmatpush1.bf16.msra.mxu0 0
  %1195 = vmatprep.subr.bf16.mxu0 0
  %1196 = vmatpush1.bf16.msra.mxu0 %v1003
  %1197 = vmatprep.subr.bf16.mxu0 0
  %1198 = vmatpush1.bf16.msra.mxu0 %v1002
  %1199 = vmatprep.subr.bf16.mxu0 0
  %1200 = vmatpush2.bf16.msra.mxu0 0
  %1201 = vmatprep.subr.bf16.mxu0 0
  %1202 = vmatpush2.bf16.msra.mxu0 0
  %1203 = vmatprep.subr.bf16.mxu0 0
  %1204 = vmatpush2.bf16.msra.mxu0 0
  %1205 = vmatprep.subr.bf16.mxu0 0
  %1206 = vmatpush2.bf16.msra.mxu0 0
  %1207 = vmatprep.subr.bf16.mxu0 0
  %1208 = vmatpush2.bf16.msra.mxu0 0
  %1209 = vmatprep.subr.bf16.mxu0 0
  %1210 = vmatpush2.bf16.msra.mxu0 0
  %1211 = vmatprep.subr.bf16.mxu0 0
  %1212 = vmatpush2.bf16.msra.mxu0 0
  %1213 = vmatprep.subr.bf16.mxu0 0
  %1214 = vmatpush2.bf16.msra.mxu0 0
  %1215 = vmatprep.mubr.bf16.mxu0 0
  %1216 = vmatmul.mubr.bf16.gmra.mxu0 %v1181
  %v1217 = vpop.f32.mrf.mxu0
  %v1218 = vadd.f32 0.0, %v1217
  %v1219 = vpop.f32.mrf.mxu0
  %v1220 = vpop.f32.mrf.mxu0
  %v1221 = vpop.f32.mrf.mxu0
  %1222 = vdwg.mxu0
  %v1223 = vld [vmem:[#allocation3 + $0x10] sm:$0xff]
  %v1224 = vadd.f32 %v1223, %v1218
  %v1225 = vxor.u32 %v1224, 2147483648
  %v1226 = vmul.f32 %v1225, 1.442695
  %v1227 = vpow.pop %v1226
  %v1228 = vadd.f32 %v1227, 1.0
  %v1229 = vrcp.pop %v1228
  %v1230 = vmul.f32 1.0, %v1229
  %v1231 = vadd.f32 %v1218, %v1063
  %1233 = vrot.lane.b32.xlu0 %v1231, 64
  %v1234 = vpop.permute.xlu0 %1233
  %v1236 = vmul.f32 %v1230, %v1234
  %1238 = vrot.lane.b32.xlu0 %v1236, 64
  %v1239 = vpop.permute.xlu0 %1238
  %v1241 = vadd.f32 %v1223, %v1239
  %v1242 = vtanh.pop %v1241
  %v1243 = vsub.f32 1.0, %v1230
  %1245 = vrot.lane.b32.xlu0 %v1242, 96
  %v1246 = vpop.permute.xlu0 %1245
  %v1248 = vmul.f32 %v1243, %v1246
  %v1249 = vmul.f32 %v1230, %v1169
  %v1250 = vadd.f32 %v1248, %v1249
  %v1251 = vpack.c.bf16 %v1250, %v1250
  %v1253 = vunpack.c.l.b16 %v1251
  %v1254 = vpack.c.b16 %v1253, %v1253
  %1255 = vrot.lane.b32.xlu0 %v1254, 96
  %v1256 = vpop.permute.xlu0 %1255
  %1258 = vst.msk [vmem:[#allocation2 + $0x8] sm:$0xf] %vm277, %v1256
  %1259 = vrot.lane.b32.xlu0 %v1251, 96
  %v1260 = vpop.permute.xlu0 %1259
  %v1262 = vsel %vm81, %v1260, 0
  %1264 = vmatprep.subr.bf16.mxu0 0
  %1265 = vmatpush1.bf16.msra.mxu0 0
  %1266 = vmatprep.subr.bf16.mxu0 0
  %1267 = vmatpush1.bf16.msra.mxu0 0
  %1268 = vmatprep.subr.bf16.mxu0 0
  %1269 = vmatpush1.bf16.msra.mxu0 0
  %1270 = vmatprep.subr.bf16.mxu0 0
  %1271 = vmatpush1.bf16.msra.mxu0 0
  %1272 = vmatprep.subr.bf16.mxu0 0
  %1273 = vmatpush1.bf16.msra.mxu0 0
  %1274 = vmatprep.subr.bf16.mxu0 0
  %1275 = vmatpush1.bf16.msra.mxu0 0
  %1276 = vmatprep.subr.bf16.mxu0 0
  %1277 = vmatpush1.bf16.msra.mxu0 %v1003
  %1278 = vmatprep.subr.bf16.mxu0 0
  %1279 = vmatpush1.bf16.msra.mxu0 %v1002
  %1280 = vmatprep.subr.bf16.mxu0 0
  %1281 = vmatpush2.bf16.msra.mxu0 0
  %1282 = vmatprep.subr.bf16.mxu0 0
  %1283 = vmatpush2.bf16.msra.mxu0 0
  %1284 = vmatprep.subr.bf16.mxu0 0
  %1285 = vmatpush2.bf16.msra.mxu0 0
  %1286 = vmatprep.subr.bf16.mxu0 0
  %1287 = vmatpush2.bf16.msra.mxu0 0
  %1288 = vmatprep.subr.bf16.mxu0 0
  %1289 = vmatpush2.bf16.msra.mxu0 0
  %1290 = vmatprep.subr.bf16.mxu0 0
  %1291 = vmatpush2.bf16.msra.mxu0 0
  %1292 = vmatprep.subr.bf16.mxu0 0
  %1293 = vmatpush2.bf16.msra.mxu0 0
  %1294 = vmatprep.subr.bf16.mxu0 0
  %1295 = vmatpush2.bf16.msra.mxu0 0
  %1296 = vmatprep.mubr.bf16.mxu0 0
  %1297 = vmatmul.mubr.bf16.gmra.mxu0 %v1262
  %v1298 = vpop.f32.mrf.mxu0
  %v1299 = vadd.f32 0.0, %v1298
  %v1300 = vpop.f32.mrf.mxu0
  %v1301 = vpop.f32.mrf.mxu0
  %v1302 = vpop.f32.mrf.mxu0
  %1303 = vdwg.mxu0
  %v1304 = vld [vmem:[#allocation3 + $0x18] sm:$0xff]
  %v1305 = vadd.f32 %v1304, %v1299
  %v1306 = vxor.u32 %v1305, 2147483648
  %v1307 = vmul.f32 %v1306, 1.442695
  %v1308 = vpow.pop %v1307
  %v1309 = vadd.f32 %v1308, 1.0
  %v1310 = vrcp.pop %v1309
  %v1311 = vmul.f32 1.0, %v1310
  %v1312 = vadd.f32 %v1299, %v1063
  %1314 = vrot.lane.b32.xlu0 %v1312, 64
  %v1315 = vpop.permute.xlu0 %1314
  %v1317 = vmul.f32 %v1311, %v1315
  %1319 = vrot.lane.b32.xlu0 %v1317, 64
  %v1320 = vpop.permute.xlu0 %1319
  %v1322 = vadd.f32 %v1304, %v1320
  %v1323 = vtanh.pop %v1322
  %v1324 = vsub.f32 1.0, %v1311
  %1326 = vrot.lane.b32.xlu0 %v1323, 96
  %v1327 = vpop.permute.xlu0 %1326
  %v1329 = vmul.f32 %v1324, %v1327
  %v1330 = vmul.f32 %v1311, %v1250
  %v1331 = vadd.f32 %v1329, %v1330
  %v1332 = vpack.c.bf16 %v1331, %v1331
  %v1334 = vunpack.c.l.b16 %v1332
  %v1335 = vpack.c.b16 %v1334, %v1334
  %1336 = vrot.lane.b32.xlu0 %v1335, 96
  %v1337 = vpop.permute.xlu0 %1336
  %1339 = vst.msk [vmem:[#allocation2 + $0xc] sm:$0xf] %vm277, %v1337
  %1340 = vrot.lane.b32.xlu0 %v1332, 96
  %v1341 = vpop.permute.xlu0 %1340
  %v1343 = vsel %vm81, %v1341, 0
  %1345 = vmatprep.subr.bf16.mxu0 0
  %1346 = vmatpush1.bf16.msra.mxu0 0
  %1347 = vmatprep.subr.bf16.mxu0 0
  %1348 = vmatpush1.bf16.msra.mxu0 0
  %1349 = vmatprep.subr.bf16.mxu0 0
  %1350 = vmatpush1.bf16.msra.mxu0 0
  %1351 = vmatprep.subr.bf16.mxu0 0
  %1352 = vmatpush1.bf16.msra.mxu0 0
  %1353 = vmatprep.subr.bf16.mxu0 0
  %1354 = vmatpush1.bf16.msra.mxu0 0
  %1355 = vmatprep.subr.bf16.mxu0 0
  %1356 = vmatpush1.bf16.msra.mxu0 0
  %1357 = vmatprep.subr.bf16.mxu0 0
  %1358 = vmatpush1.bf16.msra.mxu0 %v1003
  %1359 = vmatprep.subr.bf16.mxu0 0
  %1360 = vmatpush1.bf16.msra.mxu0 %v1002
  %1361 = vmatprep.subr.bf16.mxu0 0
  %1362 = vmatpush2.bf16.msra.mxu0 0
  %1363 = vmatprep.subr.bf16.mxu0 0
  %1364 = vmatpush2.bf16.msra.mxu0 0
  %1365 = vmatprep.subr.bf16.mxu0 0
  %1366 = vmatpush2.bf16.msra.mxu0 0
  %1367 = vmatprep.subr.bf16.mxu0 0
  %1368 = vmatpush2.bf16.msra.mxu0 0
  %1369 = vmatprep.subr.bf16.mxu0 0
  %1370 = vmatpush2.bf16.msra.mxu0 0
  %1371 = vmatprep.subr.bf16.mxu0 0
  %1372 = vmatpush2.bf16.msra.mxu0 0
  %1373 = vmatprep.subr.bf16.mxu0 0
  %1374 = vmatpush2.bf16.msra.mxu0 0
  %1375 = vmatprep.subr.bf16.mxu0 0
  %1376 = vmatpush2.bf16.msra.mxu0 0
  %1377 = vmatprep.mubr.bf16.mxu0 0
  %1378 = vmatmul.mubr.bf16.gmra.mxu0 %v1343
  %v1379 = vpop.f32.mrf.mxu0
  %v1380 = vadd.f32 0.0, %v1379
  %v1381 = vpop.f32.mrf.mxu0
  %v1382 = vpop.f32.mrf.mxu0
  %v1383 = vpop.f32.mrf.mxu0
  %1384 = vdwg.mxu0
  %v1385 = vld [vmem:[#allocation3 + $0x20] sm:$0xff]
  %v1386 = vadd.f32 %v1385, %v1380
  %v1387 = vxor.u32 %v1386, 2147483648
  %v1388 = vmul.f32 %v1387, 1.442695
  %v1389 = vpow.pop %v1388
  %v1390 = vadd.f32 %v1389, 1.0
  %v1391 = vrcp.pop %v1390
  %v1392 = vmul.f32 1.0, %v1391
  %v1393 = vadd.f32 %v1380, %v1063
  %1395 = vrot.lane.b32.xlu0 %v1393, 64
  %v1396 = vpop.permute.xlu0 %1395
  %v1398 = vmul.f32 %v1392, %v1396
  %1400 = vrot.lane.b32.xlu0 %v1398, 64
  %v1401 = vpop.permute.xlu0 %1400
  %v1403 = vadd.f32 %v1385, %v1401
  %v1404 = vtanh.pop %v1403
  %v1405 = vsub.f32 1.0, %v1392
  %1407 = vrot.lane.b32.xlu0 %v1404, 96
  %v1408 = vpop.permute.xlu0 %1407
  %v1410 = vmul.f32 %v1405, %v1408
  %v1411 = vmul.f32 %v1392, %v1331
  %v1412 = vadd.f32 %v1410, %v1411
  %v1413 = vpack.c.bf16 %v1412, %v1412
  %v1415 = vunpack.c.l.b16 %v1413
  %v1416 = vpack.c.b16 %v1415, %v1415
  %1417 = vrot.lane.b32.xlu0 %v1416, 96
  %v1418 = vpop.permute.xlu0 %1417
  %1420 = vst.msk [vmem:[#allocation2 + $0x10] sm:$0xf] %vm277, %v1418
  %1421 = vrot.lane.b32.xlu0 %v1413, 96
  %v1422 = vpop.permute.xlu0 %1421
  %v1424 = vsel %vm81, %v1422, 0
  %1426 = vmatprep.subr.bf16.mxu0 0
  %1427 = vmatpush1.bf16.msra.mxu0 0
  %1428 = vmatprep.subr.bf16.mxu0 0
  %1429 = vmatpush1.bf16.msra.mxu0 0
  %1430 = vmatprep.subr.bf16.mxu0 0
  %1431 = vmatpush1.bf16.msra.mxu0 0
  %1432 = vmatprep.subr.bf16.mxu0 0
  %1433 = vmatpush1.bf16.msra.mxu0 0
  %1434 = vmatprep.subr.bf16.mxu0 0
  %1435 = vmatpush1.bf16.msra.mxu0 0
  %1436 = vmatprep.subr.bf16.mxu0 0
  %1437 = vmatpush1.bf16.msra.mxu0 0
  %1438 = vmatprep.subr.bf16.mxu0 0
  %1439 = vmatpush1.bf16.msra.mxu0 %v1003
  %1440 = vmatprep.subr.bf16.mxu0 0
  %1441 = vmatpush1.bf16.msra.mxu0 %v1002
  %1442 = vmatprep.subr.bf16.mxu0 0
  %1443 = vmatpush2.bf16.msra.mxu0 0
  %1444 = vmatprep.subr.bf16.mxu0 0
  %1445 = vmatpush2.bf16.msra.mxu0 0
  %1446 = vmatprep.subr.bf16.mxu0 0
  %1447 = vmatpush2.bf16.msra.mxu0 0
  %1448 = vmatprep.subr.bf16.mxu0 0
  %1449 = vmatpush2.bf16.msra.mxu0 0
  %1450 = vmatprep.subr.bf16.mxu0 0
  %1451 = vmatpush2.bf16.msra.mxu0 0
  %1452 = vmatprep.subr.bf16.mxu0 0
  %1453 = vmatpush2.bf16.msra.mxu0 0
  %1454 = vmatprep.subr.bf16.mxu0 0
  %1455 = vmatpush2.bf16.msra.mxu0 0
  %1456 = vmatprep.subr.bf16.mxu0 0
  %1457 = vmatpush2.bf16.msra.mxu0 0
  %1458 = vmatprep.mubr.bf16.mxu0 0
  %1459 = vmatmul.mubr.bf16.gmra.mxu0 %v1424
  %v1460 = vpop.f32.mrf.mxu0
  %v1461 = vadd.f32 0.0, %v1460
  %v1462 = vpop.f32.mrf.mxu0
  %v1463 = vpop.f32.mrf.mxu0
  %v1464 = vpop.f32.mrf.mxu0
  %1465 = vdwg.mxu0
  %v1466 = vld [vmem:[#allocation3 + $0x28] sm:$0xff]
  %v1467 = vadd.f32 %v1466, %v1461
  %v1468 = vxor.u32 %v1467, 2147483648
  %v1469 = vmul.f32 %v1468, 1.442695
  %v1470 = vpow.pop %v1469
  %v1471 = vadd.f32 %v1470, 1.0
  %v1472 = vrcp.pop %v1471
  %v1473 = vmul.f32 1.0, %v1472
  %v1474 = vadd.f32 %v1461, %v1063
  %1476 = vrot.lane.b32.xlu0 %v1474, 64
  %v1477 = vpop.permute.xlu0 %1476
  %v1479 = vmul.f32 %v1473, %v1477
  %1481 = vrot.lane.b32.xlu0 %v1479, 64
  %v1482 = vpop.permute.xlu0 %1481
  %v1484 = vadd.f32 %v1466, %v1482
  %v1485 = vtanh.pop %v1484
  %v1486 = vsub.f32 1.0, %v1473
  %1488 = vrot.lane.b32.xlu0 %v1485, 96
  %v1489 = vpop.permute.xlu0 %1488
  %v1491 = vmul.f32 %v1486, %v1489
  %v1492 = vmul.f32 %v1473, %v1412
  %v1493 = vadd.f32 %v1491, %v1492
  %v1494 = vpack.c.bf16 %v1493, %v1493
  %v1496 = vunpack.c.l.b16 %v1494
  %v1497 = vpack.c.b16 %v1496, %v1496
  %1498 = vrot.lane.b32.xlu0 %v1497, 96
  %v1499 = vpop.permute.xlu0 %1498
  %1501 = vst.msk [vmem:[#allocation2 + $0x14] sm:$0xf] %vm277, %v1499
  %1502 = vrot.lane.b32.xlu0 %v1494, 96
  %v1503 = vpop.permute.xlu0 %1502
  %v1505 = vsel %vm81, %v1503, 0
  %1507 = vmatprep.subr.bf16.mxu0 0
  %1508 = vmatpush1.bf16.msra.mxu0 0
  %1509 = vmatprep.subr.bf16.mxu0 0
  %1510 = vmatpush1.bf16.msra.mxu0 0
  %1511 = vmatprep.subr.bf16.mxu0 0
  %1512 = vmatpush1.bf16.msra.mxu0 0
  %1513 = vmatprep.subr.bf16.mxu0 0
  %1514 = vmatpush1.bf16.msra.mxu0 0
  %1515 = vmatprep.subr.bf16.mxu0 0
  %1516 = vmatpush1.bf16.msra.mxu0 0
  %1517 = vmatprep.subr.bf16.mxu0 0
  %1518 = vmatpush1.bf16.msra.mxu0 0
  %1519 = vmatprep.subr.bf16.mxu0 0
  %1520 = vmatpush1.bf16.msra.mxu0 %v1003
  %1521 = vmatprep.subr.bf16.mxu0 0
  %1522 = vmatpush1.bf16.msra.mxu0 %v1002
  %1523 = vmatprep.subr.bf16.mxu0 0
  %1524 = vmatpush2.bf16.msra.mxu0 0
  %1525 = vmatprep.subr.bf16.mxu0 0
  %1526 = vmatpush2.bf16.msra.mxu0 0
  %1527 = vmatprep.subr.bf16.mxu0 0
  %1528 = vmatpush2.bf16.msra.mxu0 0
  %1529 = vmatprep.subr.bf16.mxu0 0
  %1530 = vmatpush2.bf16.msra.mxu0 0
  %1531 = vmatprep.subr.bf16.mxu0 0
  %1532 = vmatpush2.bf16.msra.mxu0 0
  %1533 = vmatprep.subr.bf16.mxu0 0
  %1534 = vmatpush2.bf16.msra.mxu0 0
  %1535 = vmatprep.subr.bf16.mxu0 0
  %1536 = vmatpush2.bf16.msra.mxu0 0
  %1537 = vmatprep.subr.bf16.mxu0 0
  %1538 = vmatpush2.bf16.msra.mxu0 0
  %1539 = vmatprep.mubr.bf16.mxu0 0
  %1540 = vmatmul.mubr.bf16.gmra.mxu0 %v1505
  %v1541 = vpop.f32.mrf.mxu0
  %v1542 = vadd.f32 0.0, %v1541
  %v1543 = vpop.f32.mrf.mxu0
  %v1544 = vpop.f32.mrf.mxu0
  %v1545 = vpop.f32.mrf.mxu0
  %1546 = vdwg.mxu0
  %v1547 = vld [vmem:[#allocation3 + $0x30] sm:$0xff]
  %v1548 = vadd.f32 %v1547, %v1542
  %v1549 = vxor.u32 %v1548, 2147483648
  %v1550 = vmul.f32 %v1549, 1.442695
  %v1551 = vpow.pop %v1550
  %v1552 = vadd.f32 %v1551, 1.0
  %v1553 = vrcp.pop %v1552
  %v1554 = vmul.f32 1.0, %v1553
  %v1555 = vadd.f32 %v1542, %v1063
  %1557 = vrot.lane.b32.xlu0 %v1555, 64
  %v1558 = vpop.permute.xlu0 %1557
  %v1560 = vmul.f32 %v1554, %v1558
  %1562 = vrot.lane.b32.xlu0 %v1560, 64
  %v1563 = vpop.permute.xlu0 %1562
  %v1565 = vadd.f32 %v1547, %v1563
  %v1566 = vtanh.pop %v1565
  %v1567 = vsub.f32 1.0, %v1554
  %1569 = vrot.lane.b32.xlu0 %v1566, 96
  %v1570 = vpop.permute.xlu0 %1569
  %v1572 = vmul.f32 %v1567, %v1570
  %v1573 = vmul.f32 %v1554, %v1493
  %v1574 = vadd.f32 %v1572, %v1573
  %v1575 = vpack.c.bf16 %v1574, %v1574
  %v1577 = vunpack.c.l.b16 %v1575
  %v1578 = vpack.c.b16 %v1577, %v1577
  %1579 = vrot.lane.b32.xlu0 %v1578, 96
  %v1580 = vpop.permute.xlu0 %1579
  %1582 = vst.msk [vmem:[#allocation2 + $0x18] sm:$0xf] %vm277, %v1580
  %1583 = vrot.lane.b32.xlu0 %v1575, 96
  %v1584 = vpop.permute.xlu0 %1583
  %v1586 = vsel %vm81, %v1584, 0
  %1588 = vmatprep.subr.bf16.mxu0 0
  %1589 = vmatpush1.bf16.msra.mxu0 0
  %1590 = vmatprep.subr.bf16.mxu0 0
  %1591 = vmatpush1.bf16.msra.mxu0 0
  %1592 = vmatprep.subr.bf16.mxu0 0
  %1593 = vmatpush1.bf16.msra.mxu0 0
  %1594 = vmatprep.subr.bf16.mxu0 0
  %1595 = vmatpush1.bf16.msra.mxu0 0
  %1596 = vmatprep.subr.bf16.mxu0 0
  %1597 = vmatpush1.bf16.msra.mxu0 0
  %1598 = vmatprep.subr.bf16.mxu0 0
  %1599 = vmatpush1.bf16.msra.mxu0 0
  %1600 = vmatprep.subr.bf16.mxu0 0
  %1601 = vmatpush1.bf16.msra.mxu0 %v1003
  %1602 = vmatprep.subr.bf16.mxu0 0
  %1603 = vmatpush1.bf16.msra.mxu0 %v1002
  %1604 = vmatprep.subr.bf16.mxu0 0
  %1605 = vmatpush2.bf16.msra.mxu0 0
  %1606 = vmatprep.subr.bf16.mxu0 0
  %1607 = vmatpush2.bf16.msra.mxu0 0
  %1608 = vmatprep.subr.bf16.mxu0 0
  %1609 = vmatpush2.bf16.msra.mxu0 0
  %1610 = vmatprep.subr.bf16.mxu0 0
  %1611 = vmatpush2.bf16.msra.mxu0 0
  %1612 = vmatprep.subr.bf16.mxu0 0
  %1613 = vmatpush2.bf16.msra.mxu0 0
  %1614 = vmatprep.subr.bf16.mxu0 0
  %1615 = vmatpush2.bf16.msra.mxu0 0
  %1616 = vmatprep.subr.bf16.mxu0 0
  %1617 = vmatpush2.bf16.msra.mxu0 0
  %1618 = vmatprep.subr.bf16.mxu0 0
  %1619 = vmatpush2.bf16.msra.mxu0 0
  %1620 = vmatprep.mubr.bf16.mxu0 0
  %1621 = vmatmul.mubr.bf16.gmra.mxu0 %v1586
  %v1622 = vpop.f32.mrf.mxu0
  %v1623 = vadd.f32 0.0, %v1622
  %v1624 = vpop.f32.mrf.mxu0
  %v1625 = vpop.f32.mrf.mxu0
  %v1626 = vpop.f32.mrf.mxu0
  %1627 = vdwg.mxu0
  %v1628 = vld [vmem:[#allocation3 + $0x38] sm:$0xff]
  %v1629 = vadd.f32 %v1628, %v1623
  %v1630 = vxor.u32 %v1629, 2147483648
  %v1631 = vmul.f32 %v1630, 1.442695
  %v1632 = vpow.pop %v1631
  %v1633 = vadd.f32 %v1632, 1.0
  %v1634 = vrcp.pop %v1633
  %v1635 = vmul.f32 1.0, %v1634
  %v1636 = vadd.f32 %v1623, %v1063
  %1638 = vrot.lane.b32.xlu0 %v1636, 64
  %v1639 = vpop.permute.xlu0 %1638
  %v1641 = vmul.f32 %v1635, %v1639
  %1643 = vrot.lane.b32.xlu0 %v1641, 64
  %v1644 = vpop.permute.xlu0 %1643
  %v1646 = vadd.f32 %v1628, %v1644
  %v1647 = vtanh.pop %v1646
  %v1648 = vsub.f32 1.0, %v1635
  %1650 = vrot.lane.b32.xlu0 %v1647, 96
  %v1651 = vpop.permute.xlu0 %1650
  %v1653 = vmul.f32 %v1648, %v1651
  %v1654 = vmul.f32 %v1635, %v1574
  %v1655 = vadd.f32 %v1653, %v1654
  %v1656 = vpack.c.bf16 %v1655, %v1655
  %v1658 = vunpack.c.l.b16 %v1656
  %v1659 = vpack.c.b16 %v1658, %v1658
  %1660 = vrot.lane.b32.xlu0 %v1659, 96
  %v1661 = vpop.permute.xlu0 %1660
  %1663 = vst.msk [vmem:[#allocation2 + $0x1c] sm:$0xf] %vm277, %v1661
  %v1664 = vld [vmem:[#allocation2] sm:$0xf]
  %v1665 = vld [vmem:[#allocation2 + $0x4] sm:$0xf]
  %v1666 = vld [vmem:[#allocation2 + $0x8] sm:$0xf]
  %v1667 = vld [vmem:[#allocation2 + $0xc] sm:$0xf]
  %v1668 = vld [vmem:[#allocation2 + $0x10] sm:$0xf]
  %v1669 = vld [vmem:[#allocation2 + $0x14] sm:$0xf]
  %v1670 = vld [vmem:[#allocation2 + $0x18] sm:$0xf]
  %v1671 = vld [vmem:[#allocation2 + $0x1c] sm:$0xf]
  %v1672 = vld [vmem:[%s6] sm:$0xf]
  %v1673 = vld [vmem:[%s6 + $0x4] sm:$0xf]
  %v1674 = vld [vmem:[%s6 + $0x8] sm:$0xf]
  %v1675 = vld [vmem:[%s6 + $0xc] sm:$0xf]
  %v1676 = vld [vmem:[%s7] sm:$0x1]
  %v1678 = vlaneseq
  %v1679 = vshrl.u32 %v1678, 7
  %v1680 = vsub.s32 0, %v1679
  %v1681 = vrot.slane %v1676, %v1680
  %v1691 = vunpack.c.l.b16 %v1664
  %v1692 = vunpack.c.l.b16 %v1665
  %v1693 = vunpack.c.l.b16 %v1666
  %v1694 = vunpack.c.l.b16 %v1667
  %v1695 = vunpack.c.l.b16 %v1668
  %v1696 = vunpack.c.l.b16 %v1669
  %v1697 = vunpack.c.l.b16 %v1670
  %v1698 = vunpack.c.l.b16 %v1671
  %v1699 = vpack.c.b16 %v1692, %v1691
  %v1700 = vpack.c.b16 %v1694, %v1693
  %v1701 = vpack.c.b16 %v1696, %v1695
  %v1702 = vpack.c.b16 %v1698, %v1697
  %v1707 = vunpack.c.l.b16 %v1672
  %v1708 = vunpack.c.l.b16 %v1673
  %v1709 = vunpack.c.l.b16 %v1674
  %v1710 = vunpack.c.l.b16 %v1675
  %v1711 = vpack.c.b16 %v1708, %v1707
  %v1712 = vpack.c.b16 %v1710, %v1709
  %v1716 = vsel %vm81, %v1699, 0
  %v1719 = vsel %vm81, %v1700, 0
  %v1722 = vsel %vm81, %v1701, 0
  %v1725 = vsel %vm81, %v1702, 0
  %1727 = vmatprep.subr.bf16.mxu0 0
  %1728 = vmatpush1.bf16.msra.mxu0 0
  %1729 = vmatprep.subr.bf16.mxu0 0
  %1730 = vmatpush1.bf16.msra.mxu0 0
  %1731 = vmatprep.subr.bf16.mxu0 0
  %1732 = vmatpush1.bf16.msra.mxu0 0
  %1733 = vmatprep.subr.bf16.mxu0 0
  %1734 = vmatpush1.bf16.msra.mxu0 0
  %1735 = vmatprep.subr.bf16.mxu0 0
  %1736 = vmatpush1.bf16.msra.mxu0 0
  %1737 = vmatprep.subr.bf16.mxu0 0
  %1738 = vmatpush1.bf16.msra.mxu0 0
  %1739 = vmatprep.subr.bf16.mxu0 0
  %1740 = vmatpush1.bf16.msra.mxu0 %v1712
  %1741 = vmatprep.subr.bf16.mxu0 0
  %1742 = vmatpush1.bf16.msra.mxu0 %v1711
  %1743 = vmatprep.subr.bf16.mxu0 0
  %1744 = vmatpush2.bf16.msra.mxu0 0
  %1745 = vmatprep.subr.bf16.mxu0 0
  %1746 = vmatpush2.bf16.msra.mxu0 0
  %1747 = vmatprep.subr.bf16.mxu0 0
  %1748 = vmatpush2.bf16.msra.mxu0 0
  %1749 = vmatprep.subr.bf16.mxu0 0
  %1750 = vmatpush2.bf16.msra.mxu0 0
  %1751 = vmatprep.subr.bf16.mxu0 0
  %1752 = vmatpush2.bf16.msra.mxu0 0
  %1753 = vmatprep.subr.bf16.mxu0 0
  %1754 = vmatpush2.bf16.msra.mxu0 0
  %1755 = vmatprep.subr.bf16.mxu0 0
  %1756 = vmatpush2.bf16.msra.mxu0 0
  %1757 = vmatprep.subr.bf16.mxu0 0
  %1758 = vmatpush2.bf16.msra.mxu0 0
  %1759 = vmatprep.mubr.bf16.mxu0 0
  %1760 = vmatmul.mubr.bf16.gmra.mxu0 %v1716
  %v1761 = vpop.f32.mrf.mxu0
  %v1762 = vadd.f32 %v1681, %v1761
  %v1763 = vpop.f32.mrf.mxu0
  %v1764 = vpop.f32.mrf.mxu0
  %v1765 = vadd.f32 %v1681, %v1764
  %v1766 = vpop.f32.mrf.mxu0
  %1767 = vmatprep.mubr.bf16.mxu0 0
  %1768 = vmatmul.mubr.bf16.gmra.mxu0 %v1719
  %v1769 = vpop.f32.mrf.mxu0
  %v1770 = vadd.f32 %v1681, %v1769
  %v1771 = vpop.f32.mrf.mxu0
  %v1772 = vpop.f32.mrf.mxu0
  %v1773 = vadd.f32 %v1681, %v1772
  %v1774 = vpop.f32.mrf.mxu0
  %1775 = vmatprep.mubr.bf16.mxu0 0
  %1776 = vmatmul.mubr.bf16.gmra.mxu0 %v1722
  %v1777 = vpop.f32.mrf.mxu0
  %v1778 = vadd.f32 %v1681, %v1777
  %v1779 = vpop.f32.mrf.mxu0
  %v1780 = vpop.f32.mrf.mxu0
  %v1781 = vadd.f32 %v1681, %v1780
  %v1782 = vpop.f32.mrf.mxu0
  %1783 = vmatprep.mubr.bf16.mxu0 0
  %1784 = vmatmul.mubr.bf16.gmra.mxu0 %v1725
  %v1785 = vpop.f32.mrf.mxu0
  %v1786 = vadd.f32 %v1681, %v1785
  %v1787 = vpop.f32.mrf.mxu0
  %v1788 = vpop.f32.mrf.mxu0
  %v1789 = vadd.f32 %v1681, %v1788
  %v1790 = vpop.f32.mrf.mxu0
  %1791 = vdwg.mxu0
  %1792 = vst [vmem:[%s8] sm:$0xff] %v1762
  %1793 = vst [vmem:[%s8 + $0x8] sm:$0xff] %v1765
  %1794 = vst [vmem:[%s8 + $0x10] sm:$0xff] %v1770
  %1795 = vst [vmem:[%s8 + $0x18] sm:$0xff] %v1773
  %1796 = vst [vmem:[%s8 + $0x20] sm:$0xff] %v1778
  %1797 = vst [vmem:[%s8 + $0x28] sm:$0xff] %v1781
  %1798 = vst [vmem:[%s8 + $0x30] sm:$0xff] %v1786
  %1799 = vst [vmem:[%s8 + $0x38] sm:$0xff] %v1789
  // Predicated region
  $region34: #{_lambda_.1} parent=0 // pred_check
    _
  $region35: #{_lambda_.1} parent=0 // pred_check_branch
    %1801 = sbr.rel (0) target = $region37
  $region36: #{_lambda_.1} parent=0 // pred_region
    _
  $region37: #{_lambda_.1} parent=0 // pred_fallthru
    _
  // Predicated region
  $region38: #{_lambda_.1} parent=0 // pred_check
    _
  $region39: #{_lambda_.1} parent=0 // pred_check_branch
    %1803 = sbr.rel (0) target = $region41
  $region40: #{_lambda_.1} parent=0 // pred_region
    _
  $region41: #{_lambda_.1} parent=0 // pred_fallthru
    _

</llo_original>
